<compile_context>
chip_gen: v6e
topology: v6e:2x2x1
jax: 0.10.0
libtpu: 0.0.40
codegen_flags: <defaults>
</compile_context>

<pallas_src>
import functools

import numpy as np
import jax
import jax.numpy as jnp
from jax.experimental import pallas as pl
from jax.experimental.pallas import tpu as pltpu


# ----------------------------------------------------------------------------- helpers
def _round_up(x, m):
    return ((x + m - 1) // m) * m


def fold_bn(w, b, gamma, beta, mean, var, eps=1e-5):
    """Fold eval-mode BatchNorm1d into the preceding Linear (w: (in, out), b: (out,))."""
    scale = gamma / jnp.sqrt(var + eps)
    return w * scale[None, :], b * scale + (beta - mean * scale)


# ----------------------------------------------------------------------------- Pallas kernel
def _gen_mlp_kernel(slope_ref, x_ref, w1_ref, b1_ref, w2_ref, b2_ref, w3_ref, b3_ref,
                    o_ref):
    """Fused Linear+BN+LeakyReLU -> Linear+BN+LeakyReLU -> Linear for one batch tile.

    x_ref:  (bm, Kp)  bf16
    w*_ref: full (padded) weight matrices, bf16, VMEM-resident across the grid
    b*_ref: (1, N)    f32 (BN already folded in)
    slope_ref: (1, 1) f32 SMEM scalar (LeakyReLU negative slope)
    """
    slope = slope_ref[0, 0]

    def leaky(h):
        return jnp.where(h >= 0.0, h, slope * h)

    x = x_ref[...]
    h = jnp.dot(x, w1_ref[...], preferred_element_type=jnp.float32) + b1_ref[...]
    h = leaky(h).astype(jnp.bfloat16)
    # GaussianNoiseLayer / Dropout: identity in eval mode.
    h = jnp.dot(h, w2_ref[...], preferred_element_type=jnp.float32) + b2_ref[...]
    h = leaky(h).astype(jnp.bfloat16)
    y = jnp.dot(h, w3_ref[...], preferred_element_type=jnp.float32) + b3_ref[...]
    o_ref[...] = y.astype(o_ref.dtype)


@functools.lru_cache(maxsize=None)
def _make_gen_call(Mp, Kp, Hp, Np, bm):
    grid = (Mp // bm,)
    return pl.pallas_call(
        _gen_mlp_kernel,
        out_shape=jax.ShapeDtypeStruct((Mp, Np), jnp.float32),
        grid_spec=pltpu.PrefetchScalarGridSpec(
            num_scalar_prefetch=0,
            grid=grid,
            in_specs=[
                pl.BlockSpec(memory_space=pltpu.MemorySpace.SMEM),  # slope scalar
                pl.BlockSpec((bm, Kp), lambda i: (i, 0)),           # x batch tile
                pl.BlockSpec((Kp, Hp), lambda i: (0, 0)),           # W1 (resident)
                pl.BlockSpec((1, Hp), lambda i: (0, 0)),            # b1
                pl.BlockSpec((Hp, Hp), lambda i: (0, 0)),           # W2 (resident)
                pl.BlockSpec((1, Hp), lambda i: (0, 0)),            # b2
                pl.BlockSpec((Hp, Np), lambda i: (0, 0)),           # W3 (resident)
                pl.BlockSpec((1, Np), lambda i: (0, 0)),            # b3
            ],
            out_specs=pl.BlockSpec((bm, Np), lambda i: (i, 0)),
        ),
        compiler_params=pltpu.CompilerParams(
            dimension_semantics=("parallel",)),
    )


# ----------------------------------------------------------------------------- params
def _lin_init(key, din, dout):
    w = jax.random.normal(key, (din, dout), jnp.float32) * np.sqrt(1.0 / din)
    b = jnp.zeros((dout,), jnp.float32)
    return w, b


def _bn_init(key, d):
    k1, k2, k3, k4 = jax.random.split(key, 4)
    gamma = 0.5 + jax.random.uniform(k1, (d,), jnp.float32)
    beta = 0.1 * jax.random.normal(k2, (d,), jnp.float32)
    mean = 0.1 * jax.random.normal(k3, (d,), jnp.float32)
    var = 0.5 + jax.random.uniform(k4, (d,), jnp.float32)
    return gamma, beta, mean, var


def init_generator_params(key, in_dim=512, out_dim=300):
    hid = (in_dim + out_dim) // 2
    k1, k2, k3, k4, k5 = jax.random.split(key, 5)
    return dict(
        l1=_lin_init(k1, in_dim, hid), bn1=_bn_init(k4, hid),
        l2=_lin_init(k2, hid, hid), bn2=_bn_init(k5, hid),
        l3=_lin_init(k3, hid, out_dim),
        slope=0.2,  # LeakyReLU(0.2)  (use_prelu=False default)
    )


def _pad2(a, r, c):
    return jnp.pad(a, ((0, r - a.shape[0]), (0, c - a.shape[1])))


def prepare_generator(params):
    """Fold BN, pad every feature dim to a multiple of 128, cast weights to bf16.

    Done once (outside the per-forward hot path).  Zero-padded weight columns/rows
    keep the extra lanes exactly zero through the LeakyReLU, so results are exact
    after the final slice.
    """
    in_dim, hid = params['l1'][0].shape
    out_dim = params['l3'][0].shape[1]
    Kp, Hp, Np = _round_up(in_dim, 128), _round_up(hid, 128), _round_up(out_dim, 128)

    w1, b1 = fold_bn(*params['l1'], *params['bn1'])
    w2, b2 = fold_bn(*params['l2'], *params['bn2'])
    w3, b3 = params['l3']

    return dict(
        in_dim=in_dim, out_dim=out_dim, Kp=Kp, Hp=Hp, Np=Np,
        w1=_pad2(w1, Kp, Hp).astype(jnp.bfloat16),
        b1=jnp.pad(b1, (0, Hp - hid)).reshape(1, Hp).astype(jnp.float32),
        w2=_pad2(w2, Hp, Hp).astype(jnp.bfloat16),
        b2=jnp.pad(b2, (0, Hp - hid)).reshape(1, Hp).astype(jnp.float32),
        w3=_pad2(w3, Hp, Np).astype(jnp.bfloat16),
        b3=jnp.pad(b3, (0, Np - out_dim)).reshape(1, Np).astype(jnp.float32),
        slope=jnp.full((1, 1), params['slope'], jnp.float32),
    )


# ----------------------------------------------------------------------------- forward
def generator_forward_pallas(prep, x):
    """Generator.forward(x) (eval mode) via one fused Pallas kernel.  x: (B, in_dim)."""
    B, in_dim = x.shape
    assert in_dim == prep['in_dim']
    Kp, Hp, Np = prep['Kp'], prep['Hp'], prep['Np']
    bm = 256 if B >= 256 else _round_up(max(B, 1), 8)
    Mp = _round_up(B, bm)
    xp = jnp.pad(x, ((0, Mp - B), (0, Kp - in_dim))).astype(jnp.bfloat16)
    y = _make_gen_call(Mp, Kp, Hp, Np, bm)(
        prep['slope'], xp,
        prep['w1'], prep['b1'], prep['w2'], prep['b2'], prep['w3'], prep['b3'])
    return y[:B, :prep['out_dim']]


def generator_reference(params, x):
    """Pure-JAX f32 reference (eval-mode semantics) for correctness checking."""
    slope = params['slope']
    w1, b1 = fold_bn(*params['l1'], *params['bn1'])
    h = x @ w1 + b1
    h = jnp.where(h >= 0.0, h, slope * h)
    w2, b2 = fold_bn(*params['l2'], *params['bn2'])
    h = h @ w2 + b2
    h = jnp.where(h >= 0.0, h, slope * h)
    w3, b3 = params['l3']
    return h @ w3 + b3


# ----------------------------------------------------------------------------- main
if __name__ == "__main__":
    key = jax.random.PRNGKey(0)
    k_x, k_p = jax.random.split(key)

    B, in_dim, out_dim = 4, 512, 300          # module defaults; hid = 406
    x = jax.random.normal(k_x, (B, in_dim), jnp.float32)

    params = init_generator_params(k_p, in_dim, out_dim)
    prep = prepare_generator(params)

    y = generator_forward_pallas(prep, x)
    jax.block_until_ready(y)

    assert y.shape == (B, out_dim)

    ref = generator_reference(params, x)
    err = float(jnp.max(jnp.abs(y - ref)))
    # bf16 operands + f32 accumulation: small, bounded deviation from the f32 reference.
    assert err < 0.3, f"max abs error {err} too large"

    print("KERNEL_OK")
</pallas_src>

<mosaic_0001>
module attributes {stable_mosaic.version = 11 : i64} {
  func.func @_gen_mlp_kernel(%arg0: i32, %arg1: memref<1x1xf32, #tpu.memory_space<smem>>, %arg2: memref<8x512xbf16, #tpu.memory_space<vmem>>, %arg3: memref<512x512xbf16, #tpu.memory_space<vmem>>, %arg4: memref<1x512xf32, #tpu.memory_space<vmem>>, %arg5: memref<512x512xbf16, #tpu.memory_space<vmem>>, %arg6: memref<1x512xf32, #tpu.memory_space<vmem>>, %arg7: memref<512x384xbf16, #tpu.memory_space<vmem>>, %arg8: memref<1x384xf32, #tpu.memory_space<vmem>>, %arg9: memref<8x384xf32, #tpu.memory_space<vmem>>) attributes {dimension_semantics = [#tpu.dimension_semantics<parallel>], iteration_bounds = array<i64: 1>, scalar_prefetch = 0 : i64, scratch_operands = 0 : i64, tpu.core_type = #tpu.core_type<tc>, window_params = [{transform_indices = @transform_0, window_bounds = array<i64: 1, 1>}, {transform_indices = @transform_1, window_bounds = array<i64: 8, 512>}, {pipeline_mode = #tpu.pipeline_mode<synchronous>, transform_indices = @transform_2, window_bounds = array<i64: 512, 512>}, {pipeline_mode = #tpu.pipeline_mode<synchronous>, transform_indices = @transform_3, window_bounds = array<i64: 1, 512>}, {pipeline_mode = #tpu.pipeline_mode<synchronous>, transform_indices = @transform_4, window_bounds = array<i64: 512, 512>}, {pipeline_mode = #tpu.pipeline_mode<synchronous>, transform_indices = @transform_5, window_bounds = array<i64: 1, 512>}, {pipeline_mode = #tpu.pipeline_mode<synchronous>, transform_indices = @transform_6, window_bounds = array<i64: 512, 384>}, {pipeline_mode = #tpu.pipeline_mode<synchronous>, transform_indices = @transform_7, window_bounds = array<i64: 1, 384>}, {transform_indices = @transform_8, window_bounds = array<i64: 8, 384>}]} {
    %c0 = arith.constant 0 : index
    %c0_0 = arith.constant 0 : index
    %0 = memref.load %arg1[%c0, %c0_0] : memref<1x1xf32, #tpu.memory_space<smem>>
    %c0_1 = arith.constant 0 : index
    %c0_2 = arith.constant 0 : index
    %1 = vector.load %arg2[%c0_1, %c0_2] : memref<8x512xbf16, #tpu.memory_space<vmem>>, vector<8x512xbf16>
    %c0_3 = arith.constant 0 : index
    %c0_4 = arith.constant 0 : index
    %2 = vector.load %arg3[%c0_3, %c0_4] : memref<512x512xbf16, #tpu.memory_space<vmem>>, vector<512x512xbf16>
    %cst = arith.constant dense<0.000000e+00> : vector<8x512xf32>
    %3 = tpu.matmul %1, %2, %cst {dimension_numbers = #tpu.dot_dimension_numbers<[1], [0], [0], [1], [0, 0, 1, 1], [], []>} : vector<8x512xbf16>, vector<512x512xbf16>, vector<8x512xf32> -> vector<8x512xf32>
    %c0_5 = arith.constant 0 : index
    %c0_6 = arith.constant 0 : index
    %4 = vector.load %arg4[%c0_5, %c0_6] : memref<1x512xf32, #tpu.memory_space<vmem>>, vector<1x512xf32>
    %5 = vector.broadcast %4 : vector<1x512xf32> to vector<8x512xf32>
    %6 = arith.addf %3, %5 : vector<8x512xf32>
    %cst_7 = arith.constant 0.000000e+00 : f32
    %7 = vector.broadcast %cst_7 : f32 to vector<8x512xf32>
    %8 = arith.cmpf oge, %6, %7 : vector<8x512xf32>
    %9 = vector.broadcast %0 : f32 to vector<8x512xf32>
    %10 = arith.mulf %9, %6 : vector<8x512xf32>
    %11 = arith.select %8, %6, %10 : vector<8x512xi1>, vector<8x512xf32>
    %12 = arith.truncf %11 : vector<8x512xf32> to vector<8x512xbf16>
    %c0_8 = arith.constant 0 : index
    %c0_9 = arith.constant 0 : index
    %13 = vector.load %arg5[%c0_8, %c0_9] : memref<512x512xbf16, #tpu.memory_space<vmem>>, vector<512x512xbf16>
    %cst_10 = arith.constant dense<0.000000e+00> : vector<8x512xf32>
    %14 = tpu.matmul %12, %13, %cst_10 {dimension_numbers = #tpu.dot_dimension_numbers<[1], [0], [0], [1], [0, 0, 1, 1], [], []>} : vector<8x512xbf16>, vector<512x512xbf16>, vector<8x512xf32> -> vector<8x512xf32>
    %c0_11 = arith.constant 0 : index
    %c0_12 = arith.constant 0 : index
    %15 = vector.load %arg6[%c0_11, %c0_12] : memref<1x512xf32, #tpu.memory_space<vmem>>, vector<1x512xf32>
    %16 = vector.broadcast %15 : vector<1x512xf32> to vector<8x512xf32>
    %17 = arith.addf %14, %16 : vector<8x512xf32>
    %cst_13 = arith.constant 0.000000e+00 : f32
    %18 = vector.broadcast %cst_13 : f32 to vector<8x512xf32>
    %19 = arith.cmpf oge, %17, %18 : vector<8x512xf32>
    %20 = vector.broadcast %0 : f32 to vector<8x512xf32>
    %21 = arith.mulf %20, %17 : vector<8x512xf32>
    %22 = arith.select %19, %17, %21 : vector<8x512xi1>, vector<8x512xf32>
    %23 = arith.truncf %22 : vector<8x512xf32> to vector<8x512xbf16>
    %c0_14 = arith.constant 0 : index
    %c0_15 = arith.constant 0 : index
    %24 = vector.load %arg7[%c0_14, %c0_15] : memref<512x384xbf16, #tpu.memory_space<vmem>>, vector<512x384xbf16>
    %cst_16 = arith.constant dense<0.000000e+00> : vector<8x384xf32>
    %25 = tpu.matmul %23, %24, %cst_16 {dimension_numbers = #tpu.dot_dimension_numbers<[1], [0], [0], [1], [0, 0, 1, 1], [], []>} : vector<8x512xbf16>, vector<512x384xbf16>, vector<8x384xf32> -> vector<8x384xf32>
    %c0_17 = arith.constant 0 : index
    %c0_18 = arith.constant 0 : index
    %26 = vector.load %arg8[%c0_17, %c0_18] : memref<1x384xf32, #tpu.memory_space<vmem>>, vector<1x384xf32>
    %27 = vector.broadcast %26 : vector<1x384xf32> to vector<8x384xf32>
    %28 = arith.addf %25, %27 : vector<8x384xf32>
    %c0_19 = arith.constant 0 : index
    %c0_20 = arith.constant 0 : index
    %29 = vector.load %arg9[%c0_19, %c0_20] : memref<8x384xf32, #tpu.memory_space<vmem>>, vector<8x384xf32>
    tpu.vector_store %arg9[%c0_19, %c0_20], %28 {strides = array<i32>} : memref<8x384xf32, #tpu.memory_space<vmem>>, vector<8x384xf32>,
    return
  }
  func.func @transform_0(%arg0: i32) -> (i32, i32) {
    %c0_i32 = arith.constant 0 : i32
    %c0_i32_0 = arith.constant 0 : i32
    %c0_i32_1 = arith.constant 0 : i32
    return %c0_i32, %c0_i32_0 : i32, i32
  }
  func.func @transform_1(%arg0: i32) -> (i32, i32) {
    %c0_i32 = arith.constant 0 : i32
    %c0_i32_0 = arith.constant 0 : i32
    return %arg0, %c0_i32 : i32, i32
  }
  func.func @transform_2(%arg0: i32) -> (i32, i32) {
    %c0_i32 = arith.constant 0 : i32
    %c0_i32_0 = arith.constant 0 : i32
    %c0_i32_1 = arith.constant 0 : i32
    return %c0_i32, %c0_i32_0 : i32, i32
  }
  func.func @transform_3(%arg0: i32) -> (i32, i32) {
    %c0_i32 = arith.constant 0 : i32
    %c0_i32_0 = arith.constant 0 : i32
    %c0_i32_1 = arith.constant 0 : i32
    return %c0_i32, %c0_i32_0 : i32, i32
  }
  func.func @transform_4(%arg0: i32) -> (i32, i32) {
    %c0_i32 = arith.constant 0 : i32
    %c0_i32_0 = arith.constant 0 : i32
    %c0_i32_1 = arith.constant 0 : i32
    return %c0_i32, %c0_i32_0 : i32, i32
  }
  func.func @transform_5(%arg0: i32) -> (i32, i32) {
    %c0_i32 = arith.constant 0 : i32
    %c0_i32_0 = arith.constant 0 : i32
    %c0_i32_1 = arith.constant 0 : i32
    return %c0_i32, %c0_i32_0 : i32, i32
  }
  func.func @transform_6(%arg0: i32) -> (i32, i32) {
    %c0_i32 = arith.constant 0 : i32
    %c0_i32_0 = arith.constant 0 : i32
    %c0_i32_1 = arith.constant 0 : i32
    return %c0_i32, %c0_i32_0 : i32, i32
  }
  func.func @transform_7(%arg0: i32) -> (i32, i32) {
    %c0_i32 = arith.constant 0 : i32
    %c0_i32_0 = arith.constant 0 : i32
    %c0_i32_1 = arith.constant 0 : i32
    return %c0_i32, %c0_i32_0 : i32, i32
  }
  func.func @transform_8(%arg0: i32) -> (i32, i32) {
    %c0_i32 = arith.constant 0 : i32
    %c0_i32_0 = arith.constant 0 : i32
    return %arg0, %c0_i32 : i32, i32
  }
}

</mosaic_0001>

<llo_original>
// kernel: tpu_custom_call.1
$region0: #{tpu_custom_call.1}
  #allocation0 [shape = 'u32[]', space=smem, size = 0x4, offset = 0x4, fixed_abs, tag = 'smem constant byte address 0x4 - core index']
  #allocation1 [shape = 'u32[144,128]{1,0:T(1,128)}', space=vmem, size = 0x12000, scoped, tag = 'internal scratch']
  #allocation2 [shape = 'f32[1,1]{1,0:T(1,128)S(6)}', space=smem, size = 0x200, scoped, tag = 'scoped memory for tpu_custom_call.1']
  %s0 = inlined_call_operand.<no memory space> [shape: f32[1,1], index: 0, kind: input, shape index: {}]
  %s1 = inlined_call_operand.hbm [shape: bf16[8,512], index: 1, kind: input, shape index: {}]
  %s2 = inlined_call_operand.hbm [shape: bf16[512,512], index: 2, kind: input, shape index: {}]
  %s3 = inlined_call_operand.vmem [shape: f32[1,512], index: 3, kind: input, shape index: {}]
  %s4 = inlined_call_operand.hbm [shape: bf16[512,512], index: 4, kind: input, shape index: {}]
  %s5 = inlined_call_operand.vmem [shape: f32[1,512], index: 5, kind: input, shape index: {}]
  %s6 = inlined_call_operand.hbm [shape: bf16[512,384], index: 6, kind: input, shape index: {}]
  %s7 = inlined_call_operand.vmem [shape: f32[1,384], index: 7, kind: input, shape index: {}]
  %s8 = inlined_call_operand.hbm [shape: f32[8,384], index: 8, kind: output, shape index: {}]
  %s9 = sld [smem:[#allocation0]]
  $region58: #{tpu_custom_call.1} parent=0
    _
  %s11 = ssub.s32 1, %s9
  %s12 = scalar_select 0, %s11, %s9
  %13 = sst [smem:[#allocation2]] %s0
  $region1: #{tpu_custom_call.1} parent=0
    #allocation3 [shape = 'u8[8192]{0}', space=vmem, size = 0x2000, scoped, tag = 'input window, operand 1, single buffered']
    #allocation4 [shape = 's32[1]{0}', space=sflag, size = 0x4, scoped, tag = 'scoped memory for tpu_custom_call.1']
    #allocation5 [shape = 's32[1]{0}', space=sflag, size = 0x4, scoped, tag = 'scoped memory for tpu_custom_call.1']
    #allocation6 [shape = 'u8[524288]{0}', space=vmem, size = 0x80000, scoped, tag = 'input window, operand 2, single buffered']
    #allocation7 [shape = 's32[1]{0}', space=sflag, size = 0x4, scoped, tag = 'scoped memory for tpu_custom_call.1']
    #allocation8 [shape = 'u8[524288]{0}', space=vmem, size = 0x80000, scoped, tag = 'input window, operand 4, single buffered']
    #allocation9 [shape = 'u8[393216]{0}', space=vmem, size = 0x60000, scoped, tag = 'input window, operand 6, single buffered']
    #allocation10 [shape = 's32[1]{0}', space=sflag, size = 0x4, scoped, tag = 'scoped memory for tpu_custom_call.1']
    #allocation11 [shape = 'u8[12288]{0}', space=vmem, size = 0x3000, scoped, tag = 'output window, operand 0, single buffered']
    %14 = vsyncpa [#allocation4], 0
    %15 = vsyncpa [#allocation7], 0
    %16 = vsyncpa [#allocation10], 0
    %17 = vsyncpa [#allocation5], 0
    // Predicated region
    $region2: #{tpu_custom_call.1} parent=1 // pred_check
      _
    $region3: #{tpu_custom_call.1} parent=1 // pred_check_branch
      %19 = sbr.rel (0) target = $region5
    $region4: #{tpu_custom_call.1} parent=1 // pred_region
      _
    $region5: #{tpu_custom_call.1} parent=1 // pred_fallthru
      _
    // Predicated region
    $region6: #{tpu_custom_call.1} parent=1 // pred_check
      _
    $region7: #{tpu_custom_call.1} parent=1 // pred_check_branch
      %21 = sbr.rel (0) target = $region9
    $region8: #{tpu_custom_call.1} parent=1 // pred_region
      %s23 = ssub.s32 256, 256
      %24 = vsyncadd [#allocation4], %s23
      %s26 = sshll.u32 [#allocation3], 4
      %s27 = int_to_ptr.vmem [resolvable:$true] %s26
      %29 = dma.hbm_to_vmem [thread:$0]  %s1, 256, %s27, [#allocation4]
    $region9: #{tpu_custom_call.1} parent=1 // pred_fallthru
      _
    // Predicated region
    $region10: #{tpu_custom_call.1} parent=1 // pred_check
      _
    $region11: #{tpu_custom_call.1} parent=1 // pred_check_branch
      %31 = sbr.rel (0) target = $region13
    $region12: #{tpu_custom_call.1} parent=1 // pred_region
      %s33 = ssub.s32 16384, 16384
      %34 = vsyncadd [#allocation7], %s33
      %s35 = sshll.u32 [#allocation6], 4
      %s36 = int_to_ptr.vmem [resolvable:$true] %s35
      %41 = dma.hbm_to_vmem [thread:$0]  %s2, 16384, %s36, [#allocation7], 256, 256, 16
    $region13: #{tpu_custom_call.1} parent=1 // pred_fallthru
      _
    // Predicated region
    $region14: #{tpu_custom_call.1} parent=1 // pred_check
      _
    $region15: #{tpu_custom_call.1} parent=1 // pred_check_branch
      %43 = sbr.rel (0) target = $region17
    $region16: #{tpu_custom_call.1} parent=1 // pred_region
      _
    $region17: #{tpu_custom_call.1} parent=1 // pred_fallthru
      _
    // Predicated region
    $region18: #{tpu_custom_call.1} parent=1 // pred_check
      _
    $region19: #{tpu_custom_call.1} parent=1 // pred_check_branch
      %45 = sbr.rel (0) target = $region21
    $region20: #{tpu_custom_call.1} parent=1 // pred_region
      %s47 = ssub.s32 16384, 16384
      %48 = vsyncadd [#allocation7], %s47
      %s49 = sshll.u32 [#allocation8], 4
      %s50 = int_to_ptr.vmem [resolvable:$true] %s49
      %55 = dma.hbm_to_vmem [thread:$0]  %s4, 16384, %s50, [#allocation7], 256, 256, 16
    $region21: #{tpu_custom_call.1} parent=1 // pred_fallthru
      _
    // Predicated region
    $region22: #{tpu_custom_call.1} parent=1 // pred_check
      _
    $region23: #{tpu_custom_call.1} parent=1 // pred_check_branch
      %57 = sbr.rel (0) target = $region25
    $region24: #{tpu_custom_call.1} parent=1 // pred_region
      _
    $region25: #{tpu_custom_call.1} parent=1 // pred_fallthru
      _
    // Predicated region
    $region26: #{tpu_custom_call.1} parent=1 // pred_check
      _
    $region27: #{tpu_custom_call.1} parent=1 // pred_check_branch
      %59 = sbr.rel (0) target = $region29
    $region28: #{tpu_custom_call.1} parent=1 // pred_region
      %s61 = ssub.s32 12288, 12288
      %62 = vsyncadd [#allocation10], %s61
      %s63 = sshll.u32 [#allocation9], 4
      %s64 = int_to_ptr.vmem [resolvable:$true] %s63
      %69 = dma.hbm_to_vmem [thread:$0]  %s6, 12288, %s64, [#allocation10], 192, 192, 12
    $region29: #{tpu_custom_call.1} parent=1 // pred_fallthru
      _
    // Predicated region
    $region30: #{tpu_custom_call.1} parent=1 // pred_check
      _
    $region31: #{tpu_custom_call.1} parent=1 // pred_check_branch
      %71 = sbr.rel (0) target = $region33
    $region32: #{tpu_custom_call.1} parent=1 // pred_region
      _
    $region33: #{tpu_custom_call.1} parent=1 // pred_fallthru
      _
    // Predicated region
    $region34: #{tpu_custom_call.1} parent=1 // pred_check
      _
    $region35: #{tpu_custom_call.1} parent=1 // pred_check_branch
      %73 = sbr.rel (0) target = $region37
    $region36: #{tpu_custom_call.1} parent=1 // pred_region
      %74 = dma.done [#allocation4], 256
    $region37: #{tpu_custom_call.1} parent=1 // pred_fallthru
      _
    // Predicated region
    $region38: #{tpu_custom_call.1} parent=1 // pred_check
      _
    $region39: #{tpu_custom_call.1} parent=1 // pred_check_branch
      %76 = sbr.rel (0) target = $region41
    $region40: #{tpu_custom_call.1} parent=1 // pred_region
      %77 = dma.done [#allocation7], 16384
    $region41: #{tpu_custom_call.1} parent=1 // pred_fallthru
      _
    // Predicated region
    $region42: #{tpu_custom_call.1} parent=1 // pred_check
      _
    $region43: #{tpu_custom_call.1} parent=1 // pred_check_branch
      %79 = sbr.rel (0) target = $region45
    $region44: #{tpu_custom_call.1} parent=1 // pred_region
      %80 = dma.done [#allocation7], 16384
    $region45: #{tpu_custom_call.1} parent=1 // pred_fallthru
      _
    // Predicated region
    $region46: #{tpu_custom_call.1} parent=1 // pred_check
      _
    $region47: #{tpu_custom_call.1} parent=1 // pred_check_branch
      %82 = sbr.rel (0) target = $region49
    $region48: #{tpu_custom_call.1} parent=1 // pred_region
      %83 = dma.done [#allocation10], 12288
    $region49: #{tpu_custom_call.1} parent=1 // pred_fallthru
      _
    %s85 = sld [smem:[#allocation2]]
    %v86 = vld [vmem:[#allocation3] sm:$0xff]
    %v87 = vld [vmem:[#allocation3 + $0x8] sm:$0xff]
    %v88 = vld [vmem:[#allocation6] sm:$0xff]
    %v89 = vld [vmem:[#allocation6 + $0x8] sm:$0xff]
    %v90 = vld [vmem:[#allocation6 + $0x10] sm:$0xff]
    %v91 = vld [vmem:[#allocation6 + $0x18] sm:$0xff]
    %v92 = vld [vmem:[#allocation6 + $0x20] sm:$0xff]
    %v93 = vld [vmem:[#allocation6 + $0x28] sm:$0xff]
    %v94 = vld [vmem:[#allocation6 + $0x30] sm:$0xff]
    %v95 = vld [vmem:[#allocation6 + $0x38] sm:$0xff]
    %v96 = vld [vmem:[#allocation6 + $0x40] sm:$0xff]
    %v97 = vld [vmem:[#allocation6 + $0x48] sm:$0xff]
    %v98 = vld [vmem:[#allocation6 + $0x50] sm:$0xff]
    %v99 = vld [vmem:[#allocation6 + $0x58] sm:$0xff]
    %v100 = vld [vmem:[#allocation6 + $0x60] sm:$0xff]
    %v101 = vld [vmem:[#allocation6 + $0x68] sm:$0xff]
    %v102 = vld [vmem:[#allocation6 + $0x70] sm:$0xff]
    %v103 = vld [vmem:[#allocation6 + $0x78] sm:$0xff]
    %v104 = vld [vmem:[#allocation6 + $0x80] sm:$0xff]
    %v105 = vld [vmem:[#allocation6 + $0x88] sm:$0xff]
    %v106 = vld [vmem:[#allocation6 + $0x90] sm:$0xff]
    %v107 = vld [vmem:[#allocation6 + $0x98] sm:$0xff]
    %v108 = vld [vmem:[#allocation6 + $0xa0] sm:$0xff]
    %v109 = vld [vmem:[#allocation6 + $0xa8] sm:$0xff]
    %v110 = vld [vmem:[#allocation6 + $0xb0] sm:$0xff]
    %v111 = vld [vmem:[#allocation6 + $0xb8] sm:$0xff]
    %v112 = vld [vmem:[#allocation6 + $0xc0] sm:$0xff]
    %v113 = vld [vmem:[#allocation6 + $0xc8] sm:$0xff]
    %v114 = vld [vmem:[#allocation6 + $0xd0] sm:$0xff]
    %v115 = vld [vmem:[#allocation6 + $0xd8] sm:$0xff]
    %v116 = vld [vmem:[#allocation6 + $0xe0] sm:$0xff]
    %v117 = vld [vmem:[#allocation6 + $0xe8] sm:$0xff]
    %v118 = vld [vmem:[#allocation6 + $0xf0] sm:$0xff]
    %v119 = vld [vmem:[#allocation6 + $0xf8] sm:$0xff]
    %v120 = vld [vmem:[#allocation6 + $0x100] sm:$0xff]
    %v121 = vld [vmem:[#allocation6 + $0x108] sm:$0xff]
    %v122 = vld [vmem:[#allocation6 + $0x110] sm:$0xff]
    %v123 = vld [vmem:[#allocation6 + $0x118] sm:$0xff]
    %v124 = vld [vmem:[#allocation6 + $0x120] sm:$0xff]
    %v125 = vld [vmem:[#allocation6 + $0x128] sm:$0xff]
    %v126 = vld [vmem:[#allocation6 + $0x130] sm:$0xff]
    %v127 = vld [vmem:[#allocation6 + $0x138] sm:$0xff]
    %v128 = vld [vmem:[#allocation6 + $0x140] sm:$0xff]
    %v129 = vld [vmem:[#allocation6 + $0x148] sm:$0xff]
    %v130 = vld [vmem:[#allocation6 + $0x150] sm:$0xff]
    %v131 = vld [vmem:[#allocation6 + $0x158] sm:$0xff]
    %v132 = vld [vmem:[#allocation6 + $0x160] sm:$0xff]
    %v133 = vld [vmem:[#allocation6 + $0x168] sm:$0xff]
    %v134 = vld [vmem:[#allocation6 + $0x170] sm:$0xff]
    %v135 = vld [vmem:[#allocation6 + $0x178] sm:$0xff]
    %v136 = vld [vmem:[#allocation6 + $0x180] sm:$0xff]
    %v137 = vld [vmem:[#allocation6 + $0x188] sm:$0xff]
    %v138 = vld [vmem:[#allocation6 + $0x190] sm:$0xff]
    %v139 = vld [vmem:[#allocation6 + $0x198] sm:$0xff]
    %v140 = vld [vmem:[#allocation6 + $0x1a0] sm:$0xff]
    %v141 = vld [vmem:[#allocation6 + $0x1a8] sm:$0xff]
    %v142 = vld [vmem:[#allocation6 + $0x1b0] sm:$0xff]
    %v143 = vld [vmem:[#allocation6 + $0x1b8] sm:$0xff]
    %v144 = vld [vmem:[#allocation6 + $0x1c0] sm:$0xff]
    %v145 = vld [vmem:[#allocation6 + $0x1c8] sm:$0xff]
    %v146 = vld [vmem:[#allocation6 + $0x1d0] sm:$0xff]
    %v147 = vld [vmem:[#allocation6 + $0x1d8] sm:$0xff]
    %v148 = vld [vmem:[#allocation6 + $0x1e0] sm:$0xff]
    %v149 = vld [vmem:[#allocation6 + $0x1e8] sm:$0xff]
    %v150 = vld [vmem:[#allocation6 + $0x1f0] sm:$0xff]
    %v151 = vld [vmem:[#allocation6 + $0x1f8] sm:$0xff]
    %v152 = vld [vmem:[#allocation6 + $0x200] sm:$0xff]
    %v153 = vld [vmem:[#allocation6 + $0x208] sm:$0xff]
    %v154 = vld [vmem:[#allocation6 + $0x210] sm:$0xff]
    %v155 = vld [vmem:[#allocation6 + $0x218] sm:$0xff]
    %v156 = vld [vmem:[#allocation6 + $0x220] sm:$0xff]
    %v157 = vld [vmem:[#allocation6 + $0x228] sm:$0xff]
    %v158 = vld [vmem:[#allocation6 + $0x230] sm:$0xff]
    %v159 = vld [vmem:[#allocation6 + $0x238] sm:$0xff]
    %v160 = vld [vmem:[#allocation6 + $0x240] sm:$0xff]
    %v161 = vld [vmem:[#allocation6 + $0x248] sm:$0xff]
    %v162 = vld [vmem:[#allocation6 + $0x250] sm:$0xff]
    %v163 = vld [vmem:[#allocation6 + $0x258] sm:$0xff]
    %v164 = vld [vmem:[#allocation6 + $0x260] sm:$0xff]
    %v165 = vld [vmem:[#allocation6 + $0x268] sm:$0xff]
    %v166 = vld [vmem:[#allocation6 + $0x270] sm:$0xff]
    %v167 = vld [vmem:[#allocation6 + $0x278] sm:$0xff]
    %v168 = vld [vmem:[#allocation6 + $0x280] sm:$0xff]
    %v169 = vld [vmem:[#allocation6 + $0x288] sm:$0xff]
    %v170 = vld [vmem:[#allocation6 + $0x290] sm:$0xff]
    %v171 = vld [vmem:[#allocation6 + $0x298] sm:$0xff]
    %v172 = vld [vmem:[#allocation6 + $0x2a0] sm:$0xff]
    %v173 = vld [vmem:[#allocation6 + $0x2a8] sm:$0xff]
    %v174 = vld [vmem:[#allocation6 + $0x2b0] sm:$0xff]
    %v175 = vld [vmem:[#allocation6 + $0x2b8] sm:$0xff]
    %v176 = vld [vmem:[#allocation6 + $0x2c0] sm:$0xff]
    %v177 = vld [vmem:[#allocation6 + $0x2c8] sm:$0xff]
    %v178 = vld [vmem:[#allocation6 + $0x2d0] sm:$0xff]
    %v179 = vld [vmem:[#allocation6 + $0x2d8] sm:$0xff]
    %v180 = vld [vmem:[#allocation6 + $0x2e0] sm:$0xff]
    %v181 = vld [vmem:[#allocation6 + $0x2e8] sm:$0xff]
    %v182 = vld [vmem:[#allocation6 + $0x2f0] sm:$0xff]
    %v183 = vld [vmem:[#allocation6 + $0x2f8] sm:$0xff]
    %v184 = vld [vmem:[#allocation6 + $0x300] sm:$0xff]
    %v185 = vld [vmem:[#allocation6 + $0x308] sm:$0xff]
    %v186 = vld [vmem:[#allocation6 + $0x310] sm:$0xff]
    %v187 = vld [vmem:[#allocation6 + $0x318] sm:$0xff]
    %v188 = vld [vmem:[#allocation6 + $0x320] sm:$0xff]
    %v189 = vld [vmem:[#allocation6 + $0x328] sm:$0xff]
    %v190 = vld [vmem:[#allocation6 + $0x330] sm:$0xff]
    %v191 = vld [vmem:[#allocation6 + $0x338] sm:$0xff]
    %v192 = vld [vmem:[#allocation6 + $0x340] sm:$0xff]
    %v193 = vld [vmem:[#allocation6 + $0x348] sm:$0xff]
    %v194 = vld [vmem:[#allocation6 + $0x350] sm:$0xff]
    %v195 = vld [vmem:[#allocation6 + $0x358] sm:$0xff]
    %v196 = vld [vmem:[#allocation6 + $0x360] sm:$0xff]
    %v197 = vld [vmem:[#allocation6 + $0x368] sm:$0xff]
    %v198 = vld [vmem:[#allocation6 + $0x370] sm:$0xff]
    %v199 = vld [vmem:[#allocation6 + $0x378] sm:$0xff]
    %v200 = vld [vmem:[#allocation6 + $0x380] sm:$0xff]
    %v201 = vld [vmem:[#allocation6 + $0x388] sm:$0xff]
    %v202 = vld [vmem:[#allocation6 + $0x390] sm:$0xff]
    %v203 = vld [vmem:[#allocation6 + $0x398] sm:$0xff]
    %v204 = vld [vmem:[#allocation6 + $0x3a0] sm:$0xff]
    %v205 = vld [vmem:[#allocation6 + $0x3a8] sm:$0xff]
    %v206 = vld [vmem:[#allocation6 + $0x3b0] sm:$0xff]
    %v207 = vld [vmem:[#allocation6 + $0x3b8] sm:$0xff]
    %v208 = vld [vmem:[#allocation6 + $0x3c0] sm:$0xff]
    %v209 = vld [vmem:[#allocation6 + $0x3c8] sm:$0xff]
    %v210 = vld [vmem:[#allocation6 + $0x3d0] sm:$0xff]
    %v211 = vld [vmem:[#allocation6 + $0x3d8] sm:$0xff]
    %v212 = vld [vmem:[#allocation6 + $0x3e0] sm:$0xff]
    %v213 = vld [vmem:[#allocation6 + $0x3e8] sm:$0xff]
    %v214 = vld [vmem:[#allocation6 + $0x3f0] sm:$0xff]
    %v215 = vld [vmem:[#allocation6 + $0x3f8] sm:$0xff]
    %v216 = vld [vmem:[%s3] sm:$0xf]
    %v218 = vlaneseq
    %v219 = vshrl.u32 %v218, 7
    %v220 = vsub.s32 0, %v219
    %v221 = vrot.slane %v216, %v220
    %v222 = vlaneseq
    %v223 = vshrl.u32 %v222, 7
    %v224 = vsub.s32 1, %v223
    %v225 = vrot.slane %v216, %v224
    %v226 = vlaneseq
    %v227 = vshrl.u32 %v226, 7
    %v228 = vsub.s32 2, %v227
    %v229 = vrot.slane %v216, %v228
    %v230 = vlaneseq
    %v231 = vshrl.u32 %v230, 7
    %v232 = vsub.s32 3, %v231
    %v233 = vrot.slane %v216, %v232
    %v240 = vunpack.c.l.b16 %v86
    %v241 = vunpack.c.h.b16 %v86
    %v242 = vunpack.c.l.b16 %v87
    %v243 = vunpack.c.h.b16 %v87
    %v244 = vpack.c.b16 %v240, %v240
    %v245 = vpack.c.b16 %v241, %v241
    %v246 = vpack.c.b16 %v242, %v242
    %v247 = vpack.c.b16 %v243, %v243
    %v380 = vunpack.c.l.b16 %v88
    %v381 = vunpack.c.h.b16 %v88
    %v382 = vunpack.c.l.b16 %v89
    %v383 = vunpack.c.h.b16 %v89
    %v384 = vunpack.c.l.b16 %v90
    %v385 = vunpack.c.h.b16 %v90
    %v386 = vunpack.c.l.b16 %v91
    %v387 = vunpack.c.h.b16 %v91
    %v388 = vunpack.c.l.b16 %v92
    %v389 = vunpack.c.h.b16 %v92
    %v390 = vunpack.c.l.b16 %v93
    %v391 = vunpack.c.h.b16 %v93
    %v392 = vunpack.c.l.b16 %v94
    %v393 = vunpack.c.h.b16 %v94
    %v394 = vunpack.c.l.b16 %v95
    %v395 = vunpack.c.h.b16 %v95
    %v396 = vunpack.c.l.b16 %v96
    %v397 = vunpack.c.h.b16 %v96
    %v398 = vunpack.c.l.b16 %v97
    %v399 = vunpack.c.h.b16 %v97
    %v400 = vunpack.c.l.b16 %v98
    %v401 = vunpack.c.h.b16 %v98
    %v402 = vunpack.c.l.b16 %v99
    %v403 = vunpack.c.h.b16 %v99
    %v404 = vunpack.c.l.b16 %v100
    %v405 = vunpack.c.h.b16 %v100
    %v406 = vunpack.c.l.b16 %v101
    %v407 = vunpack.c.h.b16 %v101
    %v408 = vunpack.c.l.b16 %v102
    %v409 = vunpack.c.h.b16 %v102
    %v410 = vunpack.c.l.b16 %v103
    %v411 = vunpack.c.h.b16 %v103
    %v412 = vunpack.c.l.b16 %v104
    %v413 = vunpack.c.h.b16 %v104
    %v414 = vunpack.c.l.b16 %v105
    %v415 = vunpack.c.h.b16 %v105
    %v416 = vunpack.c.l.b16 %v106
    %v417 = vunpack.c.h.b16 %v106
    %v418 = vunpack.c.l.b16 %v107
    %v419 = vunpack.c.h.b16 %v107
    %v420 = vunpack.c.l.b16 %v108
    %v421 = vunpack.c.h.b16 %v108
    %v422 = vunpack.c.l.b16 %v109
    %v423 = vunpack.c.h.b16 %v109
    %v424 = vunpack.c.l.b16 %v110
    %v425 = vunpack.c.h.b16 %v110
    %v426 = vunpack.c.l.b16 %v111
    %v427 = vunpack.c.h.b16 %v111
    %v428 = vunpack.c.l.b16 %v112
    %v429 = vunpack.c.h.b16 %v112
    %v430 = vunpack.c.l.b16 %v113
    %v431 = vunpack.c.h.b16 %v113
    %v432 = vunpack.c.l.b16 %v114
    %v433 = vunpack.c.h.b16 %v114
    %v434 = vunpack.c.l.b16 %v115
    %v435 = vunpack.c.h.b16 %v115
    %v436 = vunpack.c.l.b16 %v116
    %v437 = vunpack.c.h.b16 %v116
    %v438 = vunpack.c.l.b16 %v117
    %v439 = vunpack.c.h.b16 %v117
    %v440 = vunpack.c.l.b16 %v118
    %v441 = vunpack.c.h.b16 %v118
    %v442 = vunpack.c.l.b16 %v119
    %v443 = vunpack.c.h.b16 %v119
    %v444 = vunpack.c.l.b16 %v120
    %v445 = vunpack.c.h.b16 %v120
    %v446 = vunpack.c.l.b16 %v121
    %v447 = vunpack.c.h.b16 %v121
    %v448 = vunpack.c.l.b16 %v122
    %v449 = vunpack.c.h.b16 %v122
    %v450 = vunpack.c.l.b16 %v123
    %v451 = vunpack.c.h.b16 %v123
    %v452 = vunpack.c.l.b16 %v124
    %v453 = vunpack.c.h.b16 %v124
    %v454 = vunpack.c.l.b16 %v125
    %v455 = vunpack.c.h.b16 %v125
    %v456 = vunpack.c.l.b16 %v126
    %v457 = vunpack.c.h.b16 %v126
    %v458 = vunpack.c.l.b16 %v127
    %v459 = vunpack.c.h.b16 %v127
    %v460 = vunpack.c.l.b16 %v128
    %v461 = vunpack.c.h.b16 %v128
    %v462 = vunpack.c.l.b16 %v129
    %v463 = vunpack.c.h.b16 %v129
    %v464 = vunpack.c.l.b16 %v130
    %v465 = vunpack.c.h.b16 %v130
    %v466 = vunpack.c.l.b16 %v131
    %v467 = vunpack.c.h.b16 %v131
    %v468 = vunpack.c.l.b16 %v132
    %v469 = vunpack.c.h.b16 %v132
    %v470 = vunpack.c.l.b16 %v133
    %v471 = vunpack.c.h.b16 %v133
    %v472 = vunpack.c.l.b16 %v134
    %v473 = vunpack.c.h.b16 %v134
    %v474 = vunpack.c.l.b16 %v135
    %v475 = vunpack.c.h.b16 %v135
    %v476 = vunpack.c.l.b16 %v136
    %v477 = vunpack.c.h.b16 %v136
    %v478 = vunpack.c.l.b16 %v137
    %v479 = vunpack.c.h.b16 %v137
    %v480 = vunpack.c.l.b16 %v138
    %v481 = vunpack.c.h.b16 %v138
    %v482 = vunpack.c.l.b16 %v139
    %v483 = vunpack.c.h.b16 %v139
    %v484 = vunpack.c.l.b16 %v140
    %v485 = vunpack.c.h.b16 %v140
    %v486 = vunpack.c.l.b16 %v141
    %v487 = vunpack.c.h.b16 %v141
    %v488 = vunpack.c.l.b16 %v142
    %v489 = vunpack.c.h.b16 %v142
    %v490 = vunpack.c.l.b16 %v143
    %v491 = vunpack.c.h.b16 %v143
    %v492 = vunpack.c.l.b16 %v144
    %v493 = vunpack.c.h.b16 %v144
    %v494 = vunpack.c.l.b16 %v145
    %v495 = vunpack.c.h.b16 %v145
    %v496 = vunpack.c.l.b16 %v146
    %v497 = vunpack.c.h.b16 %v146
    %v498 = vunpack.c.l.b16 %v147
    %v499 = vunpack.c.h.b16 %v147
    %v500 = vunpack.c.l.b16 %v148
    %v501 = vunpack.c.h.b16 %v148
    %v502 = vunpack.c.l.b16 %v149
    %v503 = vunpack.c.h.b16 %v149
    %v504 = vunpack.c.l.b16 %v150
    %v505 = vunpack.c.h.b16 %v150
    %v506 = vunpack.c.l.b16 %v151
    %v507 = vunpack.c.h.b16 %v151
    %v508 = vunpack.c.l.b16 %v152
    %v509 = vunpack.c.h.b16 %v152
    %v510 = vunpack.c.l.b16 %v153
    %v511 = vunpack.c.h.b16 %v153
    %v512 = vunpack.c.l.b16 %v154
    %v513 = vunpack.c.h.b16 %v154
    %v514 = vunpack.c.l.b16 %v155
    %v515 = vunpack.c.h.b16 %v155
    %v516 = vunpack.c.l.b16 %v156
    %v517 = vunpack.c.h.b16 %v156
    %v518 = vunpack.c.l.b16 %v157
    %v519 = vunpack.c.h.b16 %v157
    %v520 = vunpack.c.l.b16 %v158
    %v521 = vunpack.c.h.b16 %v158
    %v522 = vunpack.c.l.b16 %v159
    %v523 = vunpack.c.h.b16 %v159
    %v524 = vunpack.c.l.b16 %v160
    %v525 = vunpack.c.h.b16 %v160
    %v526 = vunpack.c.l.b16 %v161
    %v527 = vunpack.c.h.b16 %v161
    %v528 = vunpack.c.l.b16 %v162
    %v529 = vunpack.c.h.b16 %v162
    %v530 = vunpack.c.l.b16 %v163
    %v531 = vunpack.c.h.b16 %v163
    %v532 = vunpack.c.l.b16 %v164
    %v533 = vunpack.c.h.b16 %v164
    %v534 = vunpack.c.l.b16 %v165
    %v535 = vunpack.c.h.b16 %v165
    %v536 = vunpack.c.l.b16 %v166
    %v537 = vunpack.c.h.b16 %v166
    %v538 = vunpack.c.l.b16 %v167
    %v539 = vunpack.c.h.b16 %v167
    %v540 = vunpack.c.l.b16 %v168
    %v541 = vunpack.c.h.b16 %v168
    %v542 = vunpack.c.l.b16 %v169
    %v543 = vunpack.c.h.b16 %v169
    %v544 = vunpack.c.l.b16 %v170
    %v545 = vunpack.c.h.b16 %v170
    %v546 = vunpack.c.l.b16 %v171
    %v547 = vunpack.c.h.b16 %v171
    %v548 = vunpack.c.l.b16 %v172
    %v549 = vunpack.c.h.b16 %v172
    %v550 = vunpack.c.l.b16 %v173
    %v551 = vunpack.c.h.b16 %v173
    %v552 = vunpack.c.l.b16 %v174
    %v553 = vunpack.c.h.b16 %v174
    %v554 = vunpack.c.l.b16 %v175
    %v555 = vunpack.c.h.b16 %v175
    %v556 = vunpack.c.l.b16 %v176
    %v557 = vunpack.c.h.b16 %v176
    %v558 = vunpack.c.l.b16 %v177
    %v559 = vunpack.c.h.b16 %v177
    %v560 = vunpack.c.l.b16 %v178
    %v561 = vunpack.c.h.b16 %v178
    %v562 = vunpack.c.l.b16 %v179
    %v563 = vunpack.c.h.b16 %v179
    %v564 = vunpack.c.l.b16 %v180
    %v565 = vunpack.c.h.b16 %v180
    %v566 = vunpack.c.l.b16 %v181
    %v567 = vunpack.c.h.b16 %v181
    %v568 = vunpack.c.l.b16 %v182
    %v569 = vunpack.c.h.b16 %v182
    %v570 = vunpack.c.l.b16 %v183
    %v571 = vunpack.c.h.b16 %v183
    %v572 = vunpack.c.l.b16 %v184
    %v573 = vunpack.c.h.b16 %v184
    %v574 = vunpack.c.l.b16 %v185
    %v575 = vunpack.c.h.b16 %v185
    %v576 = vunpack.c.l.b16 %v186
    %v577 = vunpack.c.h.b16 %v186
    %v578 = vunpack.c.l.b16 %v187
    %v579 = vunpack.c.h.b16 %v187
    %v580 = vunpack.c.l.b16 %v188
    %v581 = vunpack.c.h.b16 %v188
    %v582 = vunpack.c.l.b16 %v189
    %v583 = vunpack.c.h.b16 %v189
    %v584 = vunpack.c.l.b16 %v190
    %v585 = vunpack.c.h.b16 %v190
    %v586 = vunpack.c.l.b16 %v191
    %v587 = vunpack.c.h.b16 %v191
    %v588 = vunpack.c.l.b16 %v192
    %v589 = vunpack.c.h.b16 %v192
    %v590 = vunpack.c.l.b16 %v193
    %v591 = vunpack.c.h.b16 %v193
    %v592 = vunpack.c.l.b16 %v194
    %v593 = vunpack.c.h.b16 %v194
    %v594 = vunpack.c.l.b16 %v195
    %v595 = vunpack.c.h.b16 %v195
    %v596 = vunpack.c.l.b16 %v196
    %v597 = vunpack.c.h.b16 %v196
    %v598 = vunpack.c.l.b16 %v197
    %v599 = vunpack.c.h.b16 %v197
    %v600 = vunpack.c.l.b16 %v198
    %v601 = vunpack.c.h.b16 %v198
    %v602 = vunpack.c.l.b16 %v199
    %v603 = vunpack.c.h.b16 %v199
    %v604 = vunpack.c.l.b16 %v200
    %v605 = vunpack.c.h.b16 %v200
    %v606 = vunpack.c.l.b16 %v201
    %v607 = vunpack.c.h.b16 %v201
    %v608 = vunpack.c.l.b16 %v202
    %v609 = vunpack.c.h.b16 %v202
    %v610 = vunpack.c.l.b16 %v203
    %v611 = vunpack.c.h.b16 %v203
    %v612 = vunpack.c.l.b16 %v204
    %v613 = vunpack.c.h.b16 %v204
    %v614 = vunpack.c.l.b16 %v205
    %v615 = vunpack.c.h.b16 %v205
    %v616 = vunpack.c.l.b16 %v206
    %v617 = vunpack.c.h.b16 %v206
    %v618 = vunpack.c.l.b16 %v207
    %v619 = vunpack.c.h.b16 %v207
    %v620 = vunpack.c.l.b16 %v208
    %v621 = vunpack.c.h.b16 %v208
    %v622 = vunpack.c.l.b16 %v209
    %v623 = vunpack.c.h.b16 %v209
    %v624 = vunpack.c.l.b16 %v210
    %v625 = vunpack.c.h.b16 %v210
    %v626 = vunpack.c.l.b16 %v211
    %v627 = vunpack.c.h.b16 %v211
    %v628 = vunpack.c.l.b16 %v212
    %v629 = vunpack.c.h.b16 %v212
    %v630 = vunpack.c.l.b16 %v213
    %v631 = vunpack.c.h.b16 %v213
    %v632 = vunpack.c.l.b16 %v214
    %v633 = vunpack.c.h.b16 %v214
    %v634 = vunpack.c.l.b16 %v215
    %v635 = vunpack.c.h.b16 %v215
    %v636 = vpack.c.b16 %v384, %v380
    %v637 = vpack.c.b16 %v385, %v381
    %v638 = vpack.c.b16 %v386, %v382
    %v639 = vpack.c.b16 %v387, %v383
    %v640 = vpack.c.b16 %v392, %v388
    %v641 = vpack.c.b16 %v393, %v389
    %v642 = vpack.c.b16 %v394, %v390
    %v643 = vpack.c.b16 %v395, %v391
    %v644 = vpack.c.b16 %v400, %v396
    %v645 = vpack.c.b16 %v401, %v397
    %v646 = vpack.c.b16 %v402, %v398
    %v647 = vpack.c.b16 %v403, %v399
    %v648 = vpack.c.b16 %v408, %v404
    %v649 = vpack.c.b16 %v409, %v405
    %v650 = vpack.c.b16 %v410, %v406
    %v651 = vpack.c.b16 %v411, %v407
    %v652 = vpack.c.b16 %v416, %v412
    %v653 = vpack.c.b16 %v417, %v413
    %v654 = vpack.c.b16 %v418, %v414
    %v655 = vpack.c.b16 %v419, %v415
    %v656 = vpack.c.b16 %v424, %v420
    %v657 = vpack.c.b16 %v425, %v421
    %v658 = vpack.c.b16 %v426, %v422
    %v659 = vpack.c.b16 %v427, %v423
    %v660 = vpack.c.b16 %v432, %v428
    %v661 = vpack.c.b16 %v433, %v429
    %v662 = vpack.c.b16 %v434, %v430
    %v663 = vpack.c.b16 %v435, %v431
    %v664 = vpack.c.b16 %v440, %v436
    %v665 = vpack.c.b16 %v441, %v437
    %v666 = vpack.c.b16 %v442, %v438
    %v667 = vpack.c.b16 %v443, %v439
    %v668 = vpack.c.b16 %v448, %v444
    %v669 = vpack.c.b16 %v449, %v445
    %v670 = vpack.c.b16 %v450, %v446
    %v671 = vpack.c.b16 %v451, %v447
    %v672 = vpack.c.b16 %v456, %v452
    %v673 = vpack.c.b16 %v457, %v453
    %v674 = vpack.c.b16 %v458, %v454
    %v675 = vpack.c.b16 %v459, %v455
    %v676 = vpack.c.b16 %v464, %v460
    %v677 = vpack.c.b16 %v465, %v461
    %v678 = vpack.c.b16 %v466, %v462
    %v679 = vpack.c.b16 %v467, %v463
    %v680 = vpack.c.b16 %v472, %v468
    %v681 = vpack.c.b16 %v473, %v469
    %v682 = vpack.c.b16 %v474, %v470
    %v683 = vpack.c.b16 %v475, %v471
    %v684 = vpack.c.b16 %v480, %v476
    %v685 = vpack.c.b16 %v481, %v477
    %v686 = vpack.c.b16 %v482, %v478
    %v687 = vpack.c.b16 %v483, %v479
    %v688 = vpack.c.b16 %v488, %v484
    %v689 = vpack.c.b16 %v489, %v485
    %v690 = vpack.c.b16 %v490, %v486
    %v691 = vpack.c.b16 %v491, %v487
    %v692 = vpack.c.b16 %v496, %v492
    %v693 = vpack.c.b16 %v497, %v493
    %v694 = vpack.c.b16 %v498, %v494
    %v695 = vpack.c.b16 %v499, %v495
    %v696 = vpack.c.b16 %v504, %v500
    %v697 = vpack.c.b16 %v505, %v501
    %v698 = vpack.c.b16 %v506, %v502
    %v699 = vpack.c.b16 %v507, %v503
    %v700 = vpack.c.b16 %v512, %v508
    %v701 = vpack.c.b16 %v513, %v509
    %v702 = vpack.c.b16 %v514, %v510
    %v703 = vpack.c.b16 %v515, %v511
    %v704 = vpack.c.b16 %v520, %v516
    %v705 = vpack.c.b16 %v521, %v517
    %v706 = vpack.c.b16 %v522, %v518
    %v707 = vpack.c.b16 %v523, %v519
    %v708 = vpack.c.b16 %v528, %v524
    %v709 = vpack.c.b16 %v529, %v525
    %v710 = vpack.c.b16 %v530, %v526
    %v711 = vpack.c.b16 %v531, %v527
    %v712 = vpack.c.b16 %v536, %v532
    %v713 = vpack.c.b16 %v537, %v533
    %v714 = vpack.c.b16 %v538, %v534
    %v715 = vpack.c.b16 %v539, %v535
    %v716 = vpack.c.b16 %v544, %v540
    %v717 = vpack.c.b16 %v545, %v541
    %v718 = vpack.c.b16 %v546, %v542
    %v719 = vpack.c.b16 %v547, %v543
    %v720 = vpack.c.b16 %v552, %v548
    %v721 = vpack.c.b16 %v553, %v549
    %v722 = vpack.c.b16 %v554, %v550
    %v723 = vpack.c.b16 %v555, %v551
    %v724 = vpack.c.b16 %v560, %v556
    %v725 = vpack.c.b16 %v561, %v557
    %v726 = vpack.c.b16 %v562, %v558
    %v727 = vpack.c.b16 %v563, %v559
    %v728 = vpack.c.b16 %v568, %v564
    %v729 = vpack.c.b16 %v569, %v565
    %v730 = vpack.c.b16 %v570, %v566
    %v731 = vpack.c.b16 %v571, %v567
    %v732 = vpack.c.b16 %v576, %v572
    %v733 = vpack.c.b16 %v577, %v573
    %v734 = vpack.c.b16 %v578, %v574
    %v735 = vpack.c.b16 %v579, %v575
    %v736 = vpack.c.b16 %v584, %v580
    %v737 = vpack.c.b16 %v585, %v581
    %v738 = vpack.c.b16 %v586, %v582
    %v739 = vpack.c.b16 %v587, %v583
    %v740 = vpack.c.b16 %v592, %v588
    %v741 = vpack.c.b16 %v593, %v589
    %v742 = vpack.c.b16 %v594, %v590
    %v743 = vpack.c.b16 %v595, %v591
    %v744 = vpack.c.b16 %v600, %v596
    %v745 = vpack.c.b16 %v601, %v597
    %v746 = vpack.c.b16 %v602, %v598
    %v747 = vpack.c.b16 %v603, %v599
    %v748 = vpack.c.b16 %v608, %v604
    %v749 = vpack.c.b16 %v609, %v605
    %v750 = vpack.c.b16 %v610, %v606
    %v751 = vpack.c.b16 %v611, %v607
    %v752 = vpack.c.b16 %v616, %v612
    %v753 = vpack.c.b16 %v617, %v613
    %v754 = vpack.c.b16 %v618, %v614
    %v755 = vpack.c.b16 %v619, %v615
    %v756 = vpack.c.b16 %v624, %v620
    %v757 = vpack.c.b16 %v625, %v621
    %v758 = vpack.c.b16 %v626, %v622
    %v759 = vpack.c.b16 %v627, %v623
    %v760 = vpack.c.b16 %v632, %v628
    %v761 = vpack.c.b16 %v633, %v629
    %v762 = vpack.c.b16 %v634, %v630
    %v763 = vpack.c.b16 %v635, %v631
    %892 = vmatprep.subr.bf16.mxu0 %v665
    %893 = vmatpush1.bf16.msra.mxu0 %v664
    %894 = vmatprep.subr.bf16.mxu0 %v661
    %895 = vmatpush1.bf16.msra.mxu0 %v660
    %896 = vmatprep.subr.bf16.mxu0 %v657
    %897 = vmatpush1.bf16.msra.mxu0 %v656
    %898 = vmatprep.subr.bf16.mxu0 %v653
    %899 = vmatpush1.bf16.msra.mxu0 %v652
    %900 = vmatprep.subr.bf16.mxu0 %v649
    %901 = vmatpush1.bf16.msra.mxu0 %v648
    %902 = vmatprep.subr.bf16.mxu0 %v645
    %903 = vmatpush1.bf16.msra.mxu0 %v644
    %904 = vmatprep.subr.bf16.mxu0 %v641
    %905 = vmatpush1.bf16.msra.mxu0 %v640
    %906 = vmatprep.subr.bf16.mxu0 %v637
    %907 = vmatpush1.bf16.msra.mxu0 %v636
    %908 = vmatprep.subr.bf16.mxu0 %v697
    %909 = vmatpush2.bf16.msra.mxu0 %v696
    %910 = vmatprep.subr.bf16.mxu0 %v693
    %911 = vmatpush2.bf16.msra.mxu0 %v692
    %912 = vmatprep.subr.bf16.mxu0 %v689
    %913 = vmatpush2.bf16.msra.mxu0 %v688
    %914 = vmatprep.subr.bf16.mxu0 %v685
    %915 = vmatpush2.bf16.msra.mxu0 %v684
    %916 = vmatprep.subr.bf16.mxu0 %v681
    %917 = vmatpush2.bf16.msra.mxu0 %v680
    %918 = vmatprep.subr.bf16.mxu0 %v677
    %919 = vmatpush2.bf16.msra.mxu0 %v676
    %920 = vmatprep.subr.bf16.mxu0 %v673
    %921 = vmatpush2.bf16.msra.mxu0 %v672
    %922 = vmatprep.subr.bf16.mxu0 %v669
    %923 = vmatpush2.bf16.msra.mxu0 %v668
    %924 = vmatprep.mubr.bf16.mxu0 %v245
    %925 = vmatmul.mubr.bf16.gmra.mxu0 %v244
    %v926 = vpop.f32.mrf.mxu0
    %v927 = vadd.f32 %v221, %v926
    %v928 = vpop.f32.mrf.mxu0
    %v929 = vadd.f32 %v225, %v928
    %v930 = vpop.f32.mrf.mxu0
    %v931 = vpop.f32.mrf.mxu0
    %932 = vdwg.mxu0
    %933 = vmatprep.subr.bf16.mxu0 %v729
    %934 = vmatpush1.bf16.msra.mxu0 %v728
    %935 = vmatprep.subr.bf16.mxu0 %v725
    %936 = vmatpush1.bf16.msra.mxu0 %v724
    %937 = vmatprep.subr.bf16.mxu0 %v721
    %938 = vmatpush1.bf16.msra.mxu0 %v720
    %939 = vmatprep.subr.bf16.mxu0 %v717
    %940 = vmatpush1.bf16.msra.mxu0 %v716
    %941 = vmatprep.subr.bf16.mxu0 %v713
    %942 = vmatpush1.bf16.msra.mxu0 %v712
    %943 = vmatprep.subr.bf16.mxu0 %v709
    %944 = vmatpush1.bf16.msra.mxu0 %v708
    %945 = vmatprep.subr.bf16.mxu0 %v705
    %946 = vmatpush1.bf16.msra.mxu0 %v704
    %947 = vmatprep.subr.bf16.mxu0 %v701
    %948 = vmatpush1.bf16.msra.mxu0 %v700
    %949 = vmatprep.subr.bf16.mxu0 %v761
    %950 = vmatpush2.bf16.msra.mxu0 %v760
    %951 = vmatprep.subr.bf16.mxu0 %v757
    %952 = vmatpush2.bf16.msra.mxu0 %v756
    %953 = vmatprep.subr.bf16.mxu0 %v753
    %954 = vmatpush2.bf16.msra.mxu0 %v752
    %955 = vmatprep.subr.bf16.mxu0 %v749
    %956 = vmatpush2.bf16.msra.mxu0 %v748
    %957 = vmatprep.subr.bf16.mxu0 %v745
    %958 = vmatpush2.bf16.msra.mxu0 %v744
    %959 = vmatprep.subr.bf16.mxu0 %v741
    %960 = vmatpush2.bf16.msra.mxu0 %v740
    %961 = vmatprep.subr.bf16.mxu0 %v737
    %962 = vmatpush2.bf16.msra.mxu0 %v736
    %963 = vmatprep.subr.bf16.mxu0 %v733
    %964 = vmatpush2.bf16.msra.mxu0 %v732
    %965 = vmatprep.mubr.bf16.mxu0 %v247
    %966 = vmatmul.mubr.bf16.gmra.mxu0 %v246
    %v967 = vpop.f32.mrf.mxu0
    %v968 = vadd.f32 %v927, %v967
    %v969 = vpop.f32.mrf.mxu0
    %v970 = vadd.f32 %v929, %v969
    %v971 = vpop.f32.mrf.mxu0
    %v972 = vpop.f32.mrf.mxu0
    %973 = vdwg.mxu0
    %974 = vmatprep.subr.bf16.mxu0 %v667
    %975 = vmatpush1.bf16.msra.mxu0 %v666
    %976 = vmatprep.subr.bf16.mxu0 %v663
    %977 = vmatpush1.bf16.msra.mxu0 %v662
    %978 = vmatprep.subr.bf16.mxu0 %v659
    %979 = vmatpush1.bf16.msra.mxu0 %v658
    %980 = vmatprep.subr.bf16.mxu0 %v655
    %981 = vmatpush1.bf16.msra.mxu0 %v654
    %982 = vmatprep.subr.bf16.mxu0 %v651
    %983 = vmatpush1.bf16.msra.mxu0 %v650
    %984 = vmatprep.subr.bf16.mxu0 %v647
    %985 = vmatpush1.bf16.msra.mxu0 %v646
    %986 = vmatprep.subr.bf16.mxu0 %v643
    %987 = vmatpush1.bf16.msra.mxu0 %v642
    %988 = vmatprep.subr.bf16.mxu0 %v639
    %989 = vmatpush1.bf16.msra.mxu0 %v638
    %990 = vmatprep.subr.bf16.mxu0 %v699
    %991 = vmatpush2.bf16.msra.mxu0 %v698
    %992 = vmatprep.subr.bf16.mxu0 %v695
    %993 = vmatpush2.bf16.msra.mxu0 %v694
    %994 = vmatprep.subr.bf16.mxu0 %v691
    %995 = vmatpush2.bf16.msra.mxu0 %v690
    %996 = vmatprep.subr.bf16.mxu0 %v687
    %997 = vmatpush2.bf16.msra.mxu0 %v686
    %998 = vmatprep.subr.bf16.mxu0 %v683
    %999 = vmatpush2.bf16.msra.mxu0 %v682
    %1000 = vmatprep.subr.bf16.mxu0 %v679
    %1001 = vmatpush2.bf16.msra.mxu0 %v678
    %1002 = vmatprep.subr.bf16.mxu0 %v675
    %1003 = vmatpush2.bf16.msra.mxu0 %v674
    %1004 = vmatprep.subr.bf16.mxu0 %v671
    %1005 = vmatpush2.bf16.msra.mxu0 %v670
    %1006 = vmatprep.mubr.bf16.mxu0 %v245
    %1007 = vmatmul.mubr.bf16.gmra.mxu0 %v244
    %v1008 = vpop.f32.mrf.mxu0
    %v1009 = vadd.f32 %v229, %v1008
    %v1010 = vpop.f32.mrf.mxu0
    %v1011 = vadd.f32 %v233, %v1010
    %v1012 = vpop.f32.mrf.mxu0
    %v1013 = vpop.f32.mrf.mxu0
    %1014 = vdwg.mxu0
    %1015 = vmatprep.subr.bf16.mxu0 %v731
    %1016 = vmatpush1.bf16.msra.mxu0 %v730
    %1017 = vmatprep.subr.bf16.mxu0 %v727
    %1018 = vmatpush1.bf16.msra.mxu0 %v726
    %1019 = vmatprep.subr.bf16.mxu0 %v723
    %1020 = vmatpush1.bf16.msra.mxu0 %v722
    %1021 = vmatprep.subr.bf16.mxu0 %v719
    %1022 = vmatpush1.bf16.msra.mxu0 %v718
    %1023 = vmatprep.subr.bf16.mxu0 %v715
    %1024 = vmatpush1.bf16.msra.mxu0 %v714
    %1025 = vmatprep.subr.bf16.mxu0 %v711
    %1026 = vmatpush1.bf16.msra.mxu0 %v710
    %1027 = vmatprep.subr.bf16.mxu0 %v707
    %1028 = vmatpush1.bf16.msra.mxu0 %v706
    %1029 = vmatprep.subr.bf16.mxu0 %v703
    %1030 = vmatpush1.bf16.msra.mxu0 %v702
    %1031 = vmatprep.subr.bf16.mxu0 %v763
    %1032 = vmatpush2.bf16.msra.mxu0 %v762
    %1033 = vmatprep.subr.bf16.mxu0 %v759
    %1034 = vmatpush2.bf16.msra.mxu0 %v758
    %1035 = vmatprep.subr.bf16.mxu0 %v755
    %1036 = vmatpush2.bf16.msra.mxu0 %v754
    %1037 = vmatprep.subr.bf16.mxu0 %v751
    %1038 = vmatpush2.bf16.msra.mxu0 %v750
    %1039 = vmatprep.subr.bf16.mxu0 %v747
    %1040 = vmatpush2.bf16.msra.mxu0 %v746
    %1041 = vmatprep.subr.bf16.mxu0 %v743
    %1042 = vmatpush2.bf16.msra.mxu0 %v742
    %1043 = vmatprep.subr.bf16.mxu0 %v739
    %1044 = vmatpush2.bf16.msra.mxu0 %v738
    %1045 = vmatprep.subr.bf16.mxu0 %v735
    %1046 = vmatpush2.bf16.msra.mxu0 %v734
    %1047 = vmatprep.mubr.bf16.mxu0 %v247
    %1048 = vmatmul.mubr.bf16.gmra.mxu0 %v246
    %v1049 = vpop.f32.mrf.mxu0
    %v1050 = vadd.f32 %v1009, %v1049
    %v1051 = vpop.f32.mrf.mxu0
    %v1052 = vadd.f32 %v1011, %v1051
    %v1053 = vpop.f32.mrf.mxu0
    %v1054 = vpop.f32.mrf.mxu0
    %1055 = vdwg.mxu0
    %vm1056 = vcmp.ge.f32.partialorder %v968, 0.0
    %vm1057 = vcmp.ge.f32.partialorder %v970, 0.0
    %vm1058 = vcmp.ge.f32.partialorder %v1050, 0.0
    %vm1059 = vcmp.ge.f32.partialorder %v1052, 0.0
    %v1060 = vstv %s85
    %v1061 = vmul.f32 %v1060, %v968
    %v1062 = vmul.f32 %v1060, %v970
    %v1063 = vmul.f32 %v1060, %v1050
    %v1064 = vmul.f32 %v1060, %v1052
    %v1065 = vsel %vm1056, %v968, %v1061
    %v1066 = vsel %vm1057, %v970, %v1062
    %v1067 = vsel %vm1058, %v1050, %v1063
    %v1068 = vsel %vm1059, %v1052, %v1064
    %v1069 = vpack.c.bf16 %v1065, %v1065
    %v1070 = vpack.c.bf16 %v1066, %v1066
    %v1071 = vpack.c.bf16 %v1067, %v1067
    %v1072 = vpack.c.bf16 %v1068, %v1068
    %v1073 = vld [vmem:[#allocation8] sm:$0xff]
    %v1074 = vld [vmem:[#allocation8 + $0x8] sm:$0xff]
    %v1075 = vld [vmem:[#allocation8 + $0x10] sm:$0xff]
    %v1076 = vld [vmem:[#allocation8 + $0x18] sm:$0xff]
    %v1077 = vld [vmem:[#allocation8 + $0x20] sm:$0xff]
    %v1078 = vld [vmem:[#allocation8 + $0x28] sm:$0xff]
    %v1079 = vld [vmem:[#allocation8 + $0x30] sm:$0xff]
    %v1080 = vld [vmem:[#allocation8 + $0x38] sm:$0xff]
    %v1081 = vld [vmem:[#allocation8 + $0x40] sm:$0xff]
    %v1082 = vld [vmem:[#allocation8 + $0x48] sm:$0xff]
    %v1083 = vld [vmem:[#allocation8 + $0x50] sm:$0xff]
    %v1084 = vld [vmem:[#allocation8 + $0x58] sm:$0xff]
    %v1085 = vld [vmem:[#allocation8 + $0x60] sm:$0xff]
    %v1086 = vld [vmem:[#allocation8 + $0x68] sm:$0xff]
    %v1087 = vld [vmem:[#allocation8 + $0x70] sm:$0xff]
    %v1088 = vld [vmem:[#allocation8 + $0x78] sm:$0xff]
    %v1089 = vld [vmem:[#allocation8 + $0x80] sm:$0xff]
    %v1090 = vld [vmem:[#allocation8 + $0x88] sm:$0xff]
    %v1091 = vld [vmem:[#allocation8 + $0x90] sm:$0xff]
    %v1092 = vld [vmem:[#allocation8 + $0x98] sm:$0xff]
    %v1093 = vld [vmem:[#allocation8 + $0xa0] sm:$0xff]
    %v1094 = vld [vmem:[#allocation8 + $0xa8] sm:$0xff]
    %v1095 = vld [vmem:[#allocation8 + $0xb0] sm:$0xff]
    %v1096 = vld [vmem:[#allocation8 + $0xb8] sm:$0xff]
    %v1097 = vld [vmem:[#allocation8 + $0xc0] sm:$0xff]
    %v1098 = vld [vmem:[#allocation8 + $0xc8] sm:$0xff]
    %v1099 = vld [vmem:[#allocation8 + $0xd0] sm:$0xff]
    %v1100 = vld [vmem:[#allocation8 + $0xd8] sm:$0xff]
    %v1101 = vld [vmem:[#allocation8 + $0xe0] sm:$0xff]
    %v1102 = vld [vmem:[#allocation8 + $0xe8] sm:$0xff]
    %v1103 = vld [vmem:[#allocation8 + $0xf0] sm:$0xff]
    %v1104 = vld [vmem:[#allocation8 + $0xf8] sm:$0xff]
    %v1105 = vld [vmem:[#allocation8 + $0x100] sm:$0xff]
    %v1106 = vld [vmem:[#allocation8 + $0x108] sm:$0xff]
    %v1107 = vld [vmem:[#allocation8 + $0x110] sm:$0xff]
    %v1108 = vld [vmem:[#allocation8 + $0x118] sm:$0xff]
    %v1109 = vld [vmem:[#allocation8 + $0x120] sm:$0xff]
    %v1110 = vld [vmem:[#allocation8 + $0x128] sm:$0xff]
    %v1111 = vld [vmem:[#allocation8 + $0x130] sm:$0xff]
    %v1112 = vld [vmem:[#allocation8 + $0x138] sm:$0xff]
    %v1113 = vld [vmem:[#allocation8 + $0x140] sm:$0xff]
    %v1114 = vld [vmem:[#allocation8 + $0x148] sm:$0xff]
    %v1115 = vld [vmem:[#allocation8 + $0x150] sm:$0xff]
    %v1116 = vld [vmem:[#allocation8 + $0x158] sm:$0xff]
    %v1117 = vld [vmem:[#allocation8 + $0x160] sm:$0xff]
    %v1118 = vld [vmem:[#allocation8 + $0x168] sm:$0xff]
    %v1119 = vld [vmem:[#allocation8 + $0x170] sm:$0xff]
    %v1120 = vld [vmem:[#allocation8 + $0x178] sm:$0xff]
    %v1121 = vld [vmem:[#allocation8 + $0x180] sm:$0xff]
    %v1122 = vld [vmem:[#allocation8 + $0x188] sm:$0xff]
    %v1123 = vld [vmem:[#allocation8 + $0x190] sm:$0xff]
    %v1124 = vld [vmem:[#allocation8 + $0x198] sm:$0xff]
    %v1125 = vld [vmem:[#allocation8 + $0x1a0] sm:$0xff]
    %v1126 = vld [vmem:[#allocation8 + $0x1a8] sm:$0xff]
    %v1127 = vld [vmem:[#allocation8 + $0x1b0] sm:$0xff]
    %v1128 = vld [vmem:[#allocation8 + $0x1b8] sm:$0xff]
    %v1129 = vld [vmem:[#allocation8 + $0x1c0] sm:$0xff]
    %v1130 = vld [vmem:[#allocation8 + $0x1c8] sm:$0xff]
    %v1131 = vld [vmem:[#allocation8 + $0x1d0] sm:$0xff]
    %v1132 = vld [vmem:[#allocation8 + $0x1d8] sm:$0xff]
    %v1133 = vld [vmem:[#allocation8 + $0x1e0] sm:$0xff]
    %v1134 = vld [vmem:[#allocation8 + $0x1e8] sm:$0xff]
    %v1135 = vld [vmem:[#allocation8 + $0x1f0] sm:$0xff]
    %v1136 = vld [vmem:[#allocation8 + $0x1f8] sm:$0xff]
    %v1137 = vld [vmem:[#allocation8 + $0x200] sm:$0xff]
    %v1138 = vld [vmem:[#allocation8 + $0x208] sm:$0xff]
    %v1139 = vld [vmem:[#allocation8 + $0x210] sm:$0xff]
    %v1140 = vld [vmem:[#allocation8 + $0x218] sm:$0xff]
    %v1141 = vld [vmem:[#allocation8 + $0x220] sm:$0xff]
    %v1142 = vld [vmem:[#allocation8 + $0x228] sm:$0xff]
    %v1143 = vld [vmem:[#allocation8 + $0x230] sm:$0xff]
    %v1144 = vld [vmem:[#allocation8 + $0x238] sm:$0xff]
    %v1145 = vld [vmem:[#allocation8 + $0x240] sm:$0xff]
    %v1146 = vld [vmem:[#allocation8 + $0x248] sm:$0xff]
    %v1147 = vld [vmem:[#allocation8 + $0x250] sm:$0xff]
    %v1148 = vld [vmem:[#allocation8 + $0x258] sm:$0xff]
    %v1149 = vld [vmem:[#allocation8 + $0x260] sm:$0xff]
    %v1150 = vld [vmem:[#allocation8 + $0x268] sm:$0xff]
    %v1151 = vld [vmem:[#allocation8 + $0x270] sm:$0xff]
    %v1152 = vld [vmem:[#allocation8 + $0x278] sm:$0xff]
    %v1153 = vld [vmem:[#allocation8 + $0x280] sm:$0xff]
    %v1154 = vld [vmem:[#allocation8 + $0x288] sm:$0xff]
    %v1155 = vld [vmem:[#allocation8 + $0x290] sm:$0xff]
    %v1156 = vld [vmem:[#allocation8 + $0x298] sm:$0xff]
    %v1157 = vld [vmem:[#allocation8 + $0x2a0] sm:$0xff]
    %v1158 = vld [vmem:[#allocation8 + $0x2a8] sm:$0xff]
    %v1159 = vld [vmem:[#allocation8 + $0x2b0] sm:$0xff]
    %v1160 = vld [vmem:[#allocation8 + $0x2b8] sm:$0xff]
    %v1161 = vld [vmem:[#allocation8 + $0x2c0] sm:$0xff]
    %v1162 = vld [vmem:[#allocation8 + $0x2c8] sm:$0xff]
    %v1163 = vld [vmem:[#allocation8 + $0x2d0] sm:$0xff]
    %v1164 = vld [vmem:[#allocation8 + $0x2d8] sm:$0xff]
    %v1165 = vld [vmem:[#allocation8 + $0x2e0] sm:$0xff]
    %v1166 = vld [vmem:[#allocation8 + $0x2e8] sm:$0xff]
    %v1167 = vld [vmem:[#allocation8 + $0x2f0] sm:$0xff]
    %v1168 = vld [vmem:[#allocation8 + $0x2f8] sm:$0xff]
    %v1169 = vld [vmem:[#allocation8 + $0x300] sm:$0xff]
    %v1170 = vld [vmem:[#allocation8 + $0x308] sm:$0xff]
    %v1171 = vld [vmem:[#allocation8 + $0x310] sm:$0xff]
    %v1172 = vld [vmem:[#allocation8 + $0x318] sm:$0xff]
    %v1173 = vld [vmem:[#allocation8 + $0x320] sm:$0xff]
    %v1174 = vld [vmem:[#allocation8 + $0x328] sm:$0xff]
    %v1175 = vld [vmem:[#allocation8 + $0x330] sm:$0xff]
    %v1176 = vld [vmem:[#allocation8 + $0x338] sm:$0xff]
    %v1177 = vld [vmem:[#allocation8 + $0x340] sm:$0xff]
    %v1178 = vld [vmem:[#allocation8 + $0x348] sm:$0xff]
    %v1179 = vld [vmem:[#allocation8 + $0x350] sm:$0xff]
    %v1180 = vld [vmem:[#allocation8 + $0x358] sm:$0xff]
    %v1181 = vld [vmem:[#allocation8 + $0x360] sm:$0xff]
    %v1182 = vld [vmem:[#allocation8 + $0x368] sm:$0xff]
    %v1183 = vld [vmem:[#allocation8 + $0x370] sm:$0xff]
    %v1184 = vld [vmem:[#allocation8 + $0x378] sm:$0xff]
    %v1185 = vld [vmem:[#allocation8 + $0x380] sm:$0xff]
    %v1186 = vld [vmem:[#allocation8 + $0x388] sm:$0xff]
    %v1187 = vld [vmem:[#allocation8 + $0x390] sm:$0xff]
    %v1188 = vld [vmem:[#allocation8 + $0x398] sm:$0xff]
    %v1189 = vld [vmem:[#allocation8 + $0x3a0] sm:$0xff]
    %v1190 = vld [vmem:[#allocation8 + $0x3a8] sm:$0xff]
    %v1191 = vld [vmem:[#allocation8 + $0x3b0] sm:$0xff]
    %v1192 = vld [vmem:[#allocation8 + $0x3b8] sm:$0xff]
    %v1193 = vld [vmem:[#allocation8 + $0x3c0] sm:$0xff]
    %v1194 = vld [vmem:[#allocation8 + $0x3c8] sm:$0xff]
    %v1195 = vld [vmem:[#allocation8 + $0x3d0] sm:$0xff]
    %v1196 = vld [vmem:[#allocation8 + $0x3d8] sm:$0xff]
    %v1197 = vld [vmem:[#allocation8 + $0x3e0] sm:$0xff]
    %v1198 = vld [vmem:[#allocation8 + $0x3e8] sm:$0xff]
    %v1199 = vld [vmem:[#allocation8 + $0x3f0] sm:$0xff]
    %v1200 = vld [vmem:[#allocation8 + $0x3f8] sm:$0xff]
    %v1201 = vld [vmem:[%s5] sm:$0xf]
    %v1203 = vlaneseq
    %v1204 = vshrl.u32 %v1203, 7
    %v1205 = vsub.s32 0, %v1204
    %v1206 = vrot.slane %v1201, %v1205
    %v1207 = vlaneseq
    %v1208 = vshrl.u32 %v1207, 7
    %v1209 = vsub.s32 1, %v1208
    %v1210 = vrot.slane %v1201, %v1209
    %v1211 = vlaneseq
    %v1212 = vshrl.u32 %v1211, 7
    %v1213 = vsub.s32 2, %v1212
    %v1214 = vrot.slane %v1201, %v1213
    %v1215 = vlaneseq
    %v1216 = vshrl.u32 %v1215, 7
    %v1217 = vsub.s32 3, %v1216
    %v1218 = vrot.slane %v1201, %v1217
    %v1351 = vunpack.c.l.b16 %v1073
    %v1352 = vunpack.c.h.b16 %v1073
    %v1353 = vunpack.c.l.b16 %v1074
    %v1354 = vunpack.c.h.b16 %v1074
    %v1355 = vunpack.c.l.b16 %v1075
    %v1356 = vunpack.c.h.b16 %v1075
    %v1357 = vunpack.c.l.b16 %v1076
    %v1358 = vunpack.c.h.b16 %v1076
    %v1359 = vunpack.c.l.b16 %v1077
    %v1360 = vunpack.c.h.b16 %v1077
    %v1361 = vunpack.c.l.b16 %v1078
    %v1362 = vunpack.c.h.b16 %v1078
    %v1363 = vunpack.c.l.b16 %v1079
    %v1364 = vunpack.c.h.b16 %v1079
    %v1365 = vunpack.c.l.b16 %v1080
    %v1366 = vunpack.c.h.b16 %v1080
    %v1367 = vunpack.c.l.b16 %v1081
    %v1368 = vunpack.c.h.b16 %v1081
    %v1369 = vunpack.c.l.b16 %v1082
    %v1370 = vunpack.c.h.b16 %v1082
    %v1371 = vunpack.c.l.b16 %v1083
    %v1372 = vunpack.c.h.b16 %v1083
    %v1373 = vunpack.c.l.b16 %v1084
    %v1374 = vunpack.c.h.b16 %v1084
    %v1375 = vunpack.c.l.b16 %v1085
    %v1376 = vunpack.c.h.b16 %v1085
    %v1377 = vunpack.c.l.b16 %v1086
    %v1378 = vunpack.c.h.b16 %v1086
    %v1379 = vunpack.c.l.b16 %v1087
    %v1380 = vunpack.c.h.b16 %v1087
    %v1381 = vunpack.c.l.b16 %v1088
    %v1382 = vunpack.c.h.b16 %v1088
    %v1383 = vunpack.c.l.b16 %v1089
    %v1384 = vunpack.c.h.b16 %v1089
    %v1385 = vunpack.c.l.b16 %v1090
    %v1386 = vunpack.c.h.b16 %v1090
    %v1387 = vunpack.c.l.b16 %v1091
    %v1388 = vunpack.c.h.b16 %v1091
    %v1389 = vunpack.c.l.b16 %v1092
    %v1390 = vunpack.c.h.b16 %v1092
    %v1391 = vunpack.c.l.b16 %v1093
    %v1392 = vunpack.c.h.b16 %v1093
    %v1393 = vunpack.c.l.b16 %v1094
    %v1394 = vunpack.c.h.b16 %v1094
    %v1395 = vunpack.c.l.b16 %v1095
    %v1396 = vunpack.c.h.b16 %v1095
    %v1397 = vunpack.c.l.b16 %v1096
    %v1398 = vunpack.c.h.b16 %v1096
    %v1399 = vunpack.c.l.b16 %v1097
    %v1400 = vunpack.c.h.b16 %v1097
    %v1401 = vunpack.c.l.b16 %v1098
    %v1402 = vunpack.c.h.b16 %v1098
    %v1403 = vunpack.c.l.b16 %v1099
    %v1404 = vunpack.c.h.b16 %v1099
    %v1405 = vunpack.c.l.b16 %v1100
    %v1406 = vunpack.c.h.b16 %v1100
    %v1407 = vunpack.c.l.b16 %v1101
    %v1408 = vunpack.c.h.b16 %v1101
    %v1409 = vunpack.c.l.b16 %v1102
    %v1410 = vunpack.c.h.b16 %v1102
    %v1411 = vunpack.c.l.b16 %v1103
    %v1412 = vunpack.c.h.b16 %v1103
    %v1413 = vunpack.c.l.b16 %v1104
    %v1414 = vunpack.c.h.b16 %v1104
    %v1415 = vunpack.c.l.b16 %v1105
    %v1416 = vunpack.c.h.b16 %v1105
    %v1417 = vunpack.c.l.b16 %v1106
    %v1418 = vunpack.c.h.b16 %v1106
    %v1419 = vunpack.c.l.b16 %v1107
    %v1420 = vunpack.c.h.b16 %v1107
    %v1421 = vunpack.c.l.b16 %v1108
    %v1422 = vunpack.c.h.b16 %v1108
    %v1423 = vunpack.c.l.b16 %v1109
    %v1424 = vunpack.c.h.b16 %v1109
    %v1425 = vunpack.c.l.b16 %v1110
    %v1426 = vunpack.c.h.b16 %v1110
    %v1427 = vunpack.c.l.b16 %v1111
    %v1428 = vunpack.c.h.b16 %v1111
    %v1429 = vunpack.c.l.b16 %v1112
    %v1430 = vunpack.c.h.b16 %v1112
    %v1431 = vunpack.c.l.b16 %v1113
    %v1432 = vunpack.c.h.b16 %v1113
    %v1433 = vunpack.c.l.b16 %v1114
    %v1434 = vunpack.c.h.b16 %v1114
    %v1435 = vunpack.c.l.b16 %v1115
    %v1436 = vunpack.c.h.b16 %v1115
    %v1437 = vunpack.c.l.b16 %v1116
    %v1438 = vunpack.c.h.b16 %v1116
    %v1439 = vunpack.c.l.b16 %v1117
    %v1440 = vunpack.c.h.b16 %v1117
    %v1441 = vunpack.c.l.b16 %v1118
    %v1442 = vunpack.c.h.b16 %v1118
    %v1443 = vunpack.c.l.b16 %v1119
    %v1444 = vunpack.c.h.b16 %v1119
    %v1445 = vunpack.c.l.b16 %v1120
    %v1446 = vunpack.c.h.b16 %v1120
    %v1447 = vunpack.c.l.b16 %v1121
    %v1448 = vunpack.c.h.b16 %v1121
    %v1449 = vunpack.c.l.b16 %v1122
    %v1450 = vunpack.c.h.b16 %v1122
    %v1451 = vunpack.c.l.b16 %v1123
    %v1452 = vunpack.c.h.b16 %v1123
    %v1453 = vunpack.c.l.b16 %v1124
    %v1454 = vunpack.c.h.b16 %v1124
    %v1455 = vunpack.c.l.b16 %v1125
    %v1456 = vunpack.c.h.b16 %v1125
    %v1457 = vunpack.c.l.b16 %v1126
    %v1458 = vunpack.c.h.b16 %v1126
    %v1459 = vunpack.c.l.b16 %v1127
    %v1460 = vunpack.c.h.b16 %v1127
    %v1461 = vunpack.c.l.b16 %v1128
    %v1462 = vunpack.c.h.b16 %v1128
    %v1463 = vunpack.c.l.b16 %v1129
    %v1464 = vunpack.c.h.b16 %v1129
    %v1465 = vunpack.c.l.b16 %v1130
    %v1466 = vunpack.c.h.b16 %v1130
    %v1467 = vunpack.c.l.b16 %v1131
    %v1468 = vunpack.c.h.b16 %v1131
    %v1469 = vunpack.c.l.b16 %v1132
    %v1470 = vunpack.c.h.b16 %v1132
    %v1471 = vunpack.c.l.b16 %v1133
    %v1472 = vunpack.c.h.b16 %v1133
    %v1473 = vunpack.c.l.b16 %v1134
    %v1474 = vunpack.c.h.b16 %v1134
    %v1475 = vunpack.c.l.b16 %v1135
    %v1476 = vunpack.c.h.b16 %v1135
    %v1477 = vunpack.c.l.b16 %v1136
    %v1478 = vunpack.c.h.b16 %v1136
    %v1479 = vunpack.c.l.b16 %v1137
    %v1480 = vunpack.c.h.b16 %v1137
    %v1481 = vunpack.c.l.b16 %v1138
    %v1482 = vunpack.c.h.b16 %v1138
    %v1483 = vunpack.c.l.b16 %v1139
    %v1484 = vunpack.c.h.b16 %v1139
    %v1485 = vunpack.c.l.b16 %v1140
    %v1486 = vunpack.c.h.b16 %v1140
    %v1487 = vunpack.c.l.b16 %v1141
    %v1488 = vunpack.c.h.b16 %v1141
    %v1489 = vunpack.c.l.b16 %v1142
    %v1490 = vunpack.c.h.b16 %v1142
    %v1491 = vunpack.c.l.b16 %v1143
    %v1492 = vunpack.c.h.b16 %v1143
    %v1493 = vunpack.c.l.b16 %v1144
    %v1494 = vunpack.c.h.b16 %v1144
    %v1495 = vunpack.c.l.b16 %v1145
    %v1496 = vunpack.c.h.b16 %v1145
    %v1497 = vunpack.c.l.b16 %v1146
    %v1498 = vunpack.c.h.b16 %v1146
    %v1499 = vunpack.c.l.b16 %v1147
    %v1500 = vunpack.c.h.b16 %v1147
    %v1501 = vunpack.c.l.b16 %v1148
    %v1502 = vunpack.c.h.b16 %v1148
    %v1503 = vunpack.c.l.b16 %v1149
    %v1504 = vunpack.c.h.b16 %v1149
    %v1505 = vunpack.c.l.b16 %v1150
    %v1506 = vunpack.c.h.b16 %v1150
    %v1507 = vunpack.c.l.b16 %v1151
    %v1508 = vunpack.c.h.b16 %v1151
    %v1509 = vunpack.c.l.b16 %v1152
    %v1510 = vunpack.c.h.b16 %v1152
    %v1511 = vunpack.c.l.b16 %v1153
    %v1512 = vunpack.c.h.b16 %v1153
    %v1513 = vunpack.c.l.b16 %v1154
    %v1514 = vunpack.c.h.b16 %v1154
    %v1515 = vunpack.c.l.b16 %v1155
    %v1516 = vunpack.c.h.b16 %v1155
    %v1517 = vunpack.c.l.b16 %v1156
    %v1518 = vunpack.c.h.b16 %v1156
    %v1519 = vunpack.c.l.b16 %v1157
    %v1520 = vunpack.c.h.b16 %v1157
    %v1521 = vunpack.c.l.b16 %v1158
    %v1522 = vunpack.c.h.b16 %v1158
    %v1523 = vunpack.c.l.b16 %v1159
    %v1524 = vunpack.c.h.b16 %v1159
    %v1525 = vunpack.c.l.b16 %v1160
    %v1526 = vunpack.c.h.b16 %v1160
    %v1527 = vunpack.c.l.b16 %v1161
    %v1528 = vunpack.c.h.b16 %v1161
    %v1529 = vunpack.c.l.b16 %v1162
    %v1530 = vunpack.c.h.b16 %v1162
    %v1531 = vunpack.c.l.b16 %v1163
    %v1532 = vunpack.c.h.b16 %v1163
    %v1533 = vunpack.c.l.b16 %v1164
    %v1534 = vunpack.c.h.b16 %v1164
    %v1535 = vunpack.c.l.b16 %v1165
    %v1536 = vunpack.c.h.b16 %v1165
    %v1537 = vunpack.c.l.b16 %v1166
    %v1538 = vunpack.c.h.b16 %v1166
    %v1539 = vunpack.c.l.b16 %v1167
    %v1540 = vunpack.c.h.b16 %v1167
    %v1541 = vunpack.c.l.b16 %v1168
    %v1542 = vunpack.c.h.b16 %v1168
    %v1543 = vunpack.c.l.b16 %v1169
    %v1544 = vunpack.c.h.b16 %v1169
    %v1545 = vunpack.c.l.b16 %v1170
    %v1546 = vunpack.c.h.b16 %v1170
    %v1547 = vunpack.c.l.b16 %v1171
    %v1548 = vunpack.c.h.b16 %v1171
    %v1549 = vunpack.c.l.b16 %v1172
    %v1550 = vunpack.c.h.b16 %v1172
    %v1551 = vunpack.c.l.b16 %v1173
    %v1552 = vunpack.c.h.b16 %v1173
    %v1553 = vunpack.c.l.b16 %v1174
    %v1554 = vunpack.c.h.b16 %v1174
    %v1555 = vunpack.c.l.b16 %v1175
    %v1556 = vunpack.c.h.b16 %v1175
    %v1557 = vunpack.c.l.b16 %v1176
    %v1558 = vunpack.c.h.b16 %v1176
    %v1559 = vunpack.c.l.b16 %v1177
    %v1560 = vunpack.c.h.b16 %v1177
    %v1561 = vunpack.c.l.b16 %v1178
    %v1562 = vunpack.c.h.b16 %v1178
    %v1563 = vunpack.c.l.b16 %v1179
    %v1564 = vunpack.c.h.b16 %v1179
    %v1565 = vunpack.c.l.b16 %v1180
    %v1566 = vunpack.c.h.b16 %v1180
    %v1567 = vunpack.c.l.b16 %v1181
    %v1568 = vunpack.c.h.b16 %v1181
    %v1569 = vunpack.c.l.b16 %v1182
    %v1570 = vunpack.c.h.b16 %v1182
    %v1571 = vunpack.c.l.b16 %v1183
    %v1572 = vunpack.c.h.b16 %v1183
    %v1573 = vunpack.c.l.b16 %v1184
    %v1574 = vunpack.c.h.b16 %v1184
    %v1575 = vunpack.c.l.b16 %v1185
    %v1576 = vunpack.c.h.b16 %v1185
    %v1577 = vunpack.c.l.b16 %v1186
    %v1578 = vunpack.c.h.b16 %v1186
    %v1579 = vunpack.c.l.b16 %v1187
    %v1580 = vunpack.c.h.b16 %v1187
    %v1581 = vunpack.c.l.b16 %v1188
    %v1582 = vunpack.c.h.b16 %v1188
    %v1583 = vunpack.c.l.b16 %v1189
    %v1584 = vunpack.c.h.b16 %v1189
    %v1585 = vunpack.c.l.b16 %v1190
    %v1586 = vunpack.c.h.b16 %v1190
    %v1587 = vunpack.c.l.b16 %v1191
    %v1588 = vunpack.c.h.b16 %v1191
    %v1589 = vunpack.c.l.b16 %v1192
    %v1590 = vunpack.c.h.b16 %v1192
    %v1591 = vunpack.c.l.b16 %v1193
    %v1592 = vunpack.c.h.b16 %v1193
    %v1593 = vunpack.c.l.b16 %v1194
    %v1594 = vunpack.c.h.b16 %v1194
    %v1595 = vunpack.c.l.b16 %v1195
    %v1596 = vunpack.c.h.b16 %v1195
    %v1597 = vunpack.c.l.b16 %v1196
    %v1598 = vunpack.c.h.b16 %v1196
    %v1599 = vunpack.c.l.b16 %v1197
    %v1600 = vunpack.c.h.b16 %v1197
    %v1601 = vunpack.c.l.b16 %v1198
    %v1602 = vunpack.c.h.b16 %v1198
    %v1603 = vunpack.c.l.b16 %v1199
    %v1604 = vunpack.c.h.b16 %v1199
    %v1605 = vunpack.c.l.b16 %v1200
    %v1606 = vunpack.c.h.b16 %v1200
    %v1607 = vpack.c.b16 %v1355, %v1351
    %v1608 = vpack.c.b16 %v1356, %v1352
    %v1609 = vpack.c.b16 %v1357, %v1353
    %v1610 = vpack.c.b16 %v1358, %v1354
    %v1611 = vpack.c.b16 %v1363, %v1359
    %v1612 = vpack.c.b16 %v1364, %v1360
    %v1613 = vpack.c.b16 %v1365, %v1361
    %v1614 = vpack.c.b16 %v1366, %v1362
    %v1615 = vpack.c.b16 %v1371, %v1367
    %v1616 = vpack.c.b16 %v1372, %v1368
    %v1617 = vpack.c.b16 %v1373, %v1369
    %v1618 = vpack.c.b16 %v1374, %v1370
    %v1619 = vpack.c.b16 %v1379, %v1375
    %v1620 = vpack.c.b16 %v1380, %v1376
    %v1621 = vpack.c.b16 %v1381, %v1377
    %v1622 = vpack.c.b16 %v1382, %v1378
    %v1623 = vpack.c.b16 %v1387, %v1383
    %v1624 = vpack.c.b16 %v1388, %v1384
    %v1625 = vpack.c.b16 %v1389, %v1385
    %v1626 = vpack.c.b16 %v1390, %v1386
    %v1627 = vpack.c.b16 %v1395, %v1391
    %v1628 = vpack.c.b16 %v1396, %v1392
    %v1629 = vpack.c.b16 %v1397, %v1393
    %v1630 = vpack.c.b16 %v1398, %v1394
    %v1631 = vpack.c.b16 %v1403, %v1399
    %v1632 = vpack.c.b16 %v1404, %v1400
    %v1633 = vpack.c.b16 %v1405, %v1401
    %v1634 = vpack.c.b16 %v1406, %v1402
    %v1635 = vpack.c.b16 %v1411, %v1407
    %v1636 = vpack.c.b16 %v1412, %v1408
    %v1637 = vpack.c.b16 %v1413, %v1409
    %v1638 = vpack.c.b16 %v1414, %v1410
    %v1639 = vpack.c.b16 %v1419, %v1415
    %v1640 = vpack.c.b16 %v1420, %v1416
    %v1641 = vpack.c.b16 %v1421, %v1417
    %v1642 = vpack.c.b16 %v1422, %v1418
    %v1643 = vpack.c.b16 %v1427, %v1423
    %v1644 = vpack.c.b16 %v1428, %v1424
    %v1645 = vpack.c.b16 %v1429, %v1425
    %v1646 = vpack.c.b16 %v1430, %v1426
    %v1647 = vpack.c.b16 %v1435, %v1431
    %v1648 = vpack.c.b16 %v1436, %v1432
    %v1649 = vpack.c.b16 %v1437, %v1433
    %v1650 = vpack.c.b16 %v1438, %v1434
    %v1651 = vpack.c.b16 %v1443, %v1439
    %v1652 = vpack.c.b16 %v1444, %v1440
    %v1653 = vpack.c.b16 %v1445, %v1441
    %v1654 = vpack.c.b16 %v1446, %v1442
    %v1655 = vpack.c.b16 %v1451, %v1447
    %v1656 = vpack.c.b16 %v1452, %v1448
    %v1657 = vpack.c.b16 %v1453, %v1449
    %v1658 = vpack.c.b16 %v1454, %v1450
    %v1659 = vpack.c.b16 %v1459, %v1455
    %v1660 = vpack.c.b16 %v1460, %v1456
    %v1661 = vpack.c.b16 %v1461, %v1457
    %v1662 = vpack.c.b16 %v1462, %v1458
    %v1663 = vpack.c.b16 %v1467, %v1463
    %v1664 = vpack.c.b16 %v1468, %v1464
    %v1665 = vpack.c.b16 %v1469, %v1465
    %v1666 = vpack.c.b16 %v1470, %v1466
    %v1667 = vpack.c.b16 %v1475, %v1471
    %v1668 = vpack.c.b16 %v1476, %v1472
    %v1669 = vpack.c.b16 %v1477, %v1473
    %v1670 = vpack.c.b16 %v1478, %v1474
    %v1671 = vpack.c.b16 %v1483, %v1479
    %v1672 = vpack.c.b16 %v1484, %v1480
    %v1673 = vpack.c.b16 %v1485, %v1481
    %v1674 = vpack.c.b16 %v1486, %v1482
    %v1675 = vpack.c.b16 %v1491, %v1487
    %v1676 = vpack.c.b16 %v1492, %v1488
    %v1677 = vpack.c.b16 %v1493, %v1489
    %v1678 = vpack.c.b16 %v1494, %v1490
    %v1679 = vpack.c.b16 %v1499, %v1495
    %v1680 = vpack.c.b16 %v1500, %v1496
    %v1681 = vpack.c.b16 %v1501, %v1497
    %v1682 = vpack.c.b16 %v1502, %v1498
    %v1683 = vpack.c.b16 %v1507, %v1503
    %v1684 = vpack.c.b16 %v1508, %v1504
    %v1685 = vpack.c.b16 %v1509, %v1505
    %v1686 = vpack.c.b16 %v1510, %v1506
    %v1687 = vpack.c.b16 %v1515, %v1511
    %v1688 = vpack.c.b16 %v1516, %v1512
    %v1689 = vpack.c.b16 %v1517, %v1513
    %v1690 = vpack.c.b16 %v1518, %v1514
    %v1691 = vpack.c.b16 %v1523, %v1519
    %v1692 = vpack.c.b16 %v1524, %v1520
    %v1693 = vpack.c.b16 %v1525, %v1521
    %v1694 = vpack.c.b16 %v1526, %v1522
    %v1695 = vpack.c.b16 %v1531, %v1527
    %v1696 = vpack.c.b16 %v1532, %v1528
    %v1697 = vpack.c.b16 %v1533, %v1529
    %v1698 = vpack.c.b16 %v1534, %v1530
    %v1699 = vpack.c.b16 %v1539, %v1535
    %v1700 = vpack.c.b16 %v1540, %v1536
    %v1701 = vpack.c.b16 %v1541, %v1537
    %v1702 = vpack.c.b16 %v1542, %v1538
    %v1703 = vpack.c.b16 %v1547, %v1543
    %v1704 = vpack.c.b16 %v1548, %v1544
    %v1705 = vpack.c.b16 %v1549, %v1545
    %v1706 = vpack.c.b16 %v1550, %v1546
    %v1707 = vpack.c.b16 %v1555, %v1551
    %v1708 = vpack.c.b16 %v1556, %v1552
    %v1709 = vpack.c.b16 %v1557, %v1553
    %v1710 = vpack.c.b16 %v1558, %v1554
    %v1711 = vpack.c.b16 %v1563, %v1559
    %v1712 = vpack.c.b16 %v1564, %v1560
    %v1713 = vpack.c.b16 %v1565, %v1561
    %v1714 = vpack.c.b16 %v1566, %v1562
    %v1715 = vpack.c.b16 %v1571, %v1567
    %v1716 = vpack.c.b16 %v1572, %v1568
    %v1717 = vpack.c.b16 %v1573, %v1569
    %v1718 = vpack.c.b16 %v1574, %v1570
    %v1719 = vpack.c.b16 %v1579, %v1575
    %v1720 = vpack.c.b16 %v1580, %v1576
    %v1721 = vpack.c.b16 %v1581, %v1577
    %v1722 = vpack.c.b16 %v1582, %v1578
    %v1723 = vpack.c.b16 %v1587, %v1583
    %v1724 = vpack.c.b16 %v1588, %v1584
    %v1725 = vpack.c.b16 %v1589, %v1585
    %v1726 = vpack.c.b16 %v1590, %v1586
    %v1727 = vpack.c.b16 %v1595, %v1591
    %v1728 = vpack.c.b16 %v1596, %v1592
    %v1729 = vpack.c.b16 %v1597, %v1593
    %v1730 = vpack.c.b16 %v1598, %v1594
    %v1731 = vpack.c.b16 %v1603, %v1599
    %v1732 = vpack.c.b16 %v1604, %v1600
    %v1733 = vpack.c.b16 %v1605, %v1601
    %v1734 = vpack.c.b16 %v1606, %v1602
    %1863 = vmatprep.subr.bf16.mxu0 %v1636
    %1864 = vmatpush1.bf16.msra.mxu0 %v1635
    %1865 = vmatprep.subr.bf16.mxu0 %v1632
    %1866 = vmatpush1.bf16.msra.mxu0 %v1631
    %1867 = vmatprep.subr.bf16.mxu0 %v1628
    %1868 = vmatpush1.bf16.msra.mxu0 %v1627
    %1869 = vmatprep.subr.bf16.mxu0 %v1624
    %1870 = vmatpush1.bf16.msra.mxu0 %v1623
    %1871 = vmatprep.subr.bf16.mxu0 %v1620
    %1872 = vmatpush1.bf16.msra.mxu0 %v1619
    %1873 = vmatprep.subr.bf16.mxu0 %v1616
    %1874 = vmatpush1.bf16.msra.mxu0 %v1615
    %1875 = vmatprep.subr.bf16.mxu0 %v1612
    %1876 = vmatpush1.bf16.msra.mxu0 %v1611
    %1877 = vmatprep.subr.bf16.mxu0 %v1608
    %1878 = vmatpush1.bf16.msra.mxu0 %v1607
    %1879 = vmatprep.subr.bf16.mxu0 %v1668
    %1880 = vmatpush2.bf16.msra.mxu0 %v1667
    %1881 = vmatprep.subr.bf16.mxu0 %v1664
    %1882 = vmatpush2.bf16.msra.mxu0 %v1663
    %1883 = vmatprep.subr.bf16.mxu0 %v1660
    %1884 = vmatpush2.bf16.msra.mxu0 %v1659
    %1885 = vmatprep.subr.bf16.mxu0 %v1656
    %1886 = vmatpush2.bf16.msra.mxu0 %v1655
    %1887 = vmatprep.subr.bf16.mxu0 %v1652
    %1888 = vmatpush2.bf16.msra.mxu0 %v1651
    %1889 = vmatprep.subr.bf16.mxu0 %v1648
    %1890 = vmatpush2.bf16.msra.mxu0 %v1647
    %1891 = vmatprep.subr.bf16.mxu0 %v1644
    %1892 = vmatpush2.bf16.msra.mxu0 %v1643
    %1893 = vmatprep.subr.bf16.mxu0 %v1640
    %1894 = vmatpush2.bf16.msra.mxu0 %v1639
    %1895 = vmatprep.mubr.bf16.mxu0 %v1070
    %1896 = vmatmul.mubr.bf16.gmra.mxu0 %v1069
    %v1897 = vpop.f32.mrf.mxu0
    %v1898 = vadd.f32 %v1206, %v1897
    %v1899 = vpop.f32.mrf.mxu0
    %v1900 = vadd.f32 %v1210, %v1899
    %v1901 = vpop.f32.mrf.mxu0
    %v1902 = vpop.f32.mrf.mxu0
    %1903 = vdwg.mxu0
    %1904 = vmatprep.subr.bf16.mxu0 %v1700
    %1905 = vmatpush1.bf16.msra.mxu0 %v1699
    %1906 = vmatprep.subr.bf16.mxu0 %v1696
    %1907 = vmatpush1.bf16.msra.mxu0 %v1695
    %1908 = vmatprep.subr.bf16.mxu0 %v1692
    %1909 = vmatpush1.bf16.msra.mxu0 %v1691
    %1910 = vmatprep.subr.bf16.mxu0 %v1688
    %1911 = vmatpush1.bf16.msra.mxu0 %v1687
    %1912 = vmatprep.subr.bf16.mxu0 %v1684
    %1913 = vmatpush1.bf16.msra.mxu0 %v1683
    %1914 = vmatprep.subr.bf16.mxu0 %v1680
    %1915 = vmatpush1.bf16.msra.mxu0 %v1679
    %1916 = vmatprep.subr.bf16.mxu0 %v1676
    %1917 = vmatpush1.bf16.msra.mxu0 %v1675
    %1918 = vmatprep.subr.bf16.mxu0 %v1672
    %1919 = vmatpush1.bf16.msra.mxu0 %v1671
    %1920 = vmatprep.subr.bf16.mxu0 %v1732
    %1921 = vmatpush2.bf16.msra.mxu0 %v1731
    %1922 = vmatprep.subr.bf16.mxu0 %v1728
    %1923 = vmatpush2.bf16.msra.mxu0 %v1727
    %1924 = vmatprep.subr.bf16.mxu0 %v1724
    %1925 = vmatpush2.bf16.msra.mxu0 %v1723
    %1926 = vmatprep.subr.bf16.mxu0 %v1720
    %1927 = vmatpush2.bf16.msra.mxu0 %v1719
    %1928 = vmatprep.subr.bf16.mxu0 %v1716
    %1929 = vmatpush2.bf16.msra.mxu0 %v1715
    %1930 = vmatprep.subr.bf16.mxu0 %v1712
    %1931 = vmatpush2.bf16.msra.mxu0 %v1711
    %1932 = vmatprep.subr.bf16.mxu0 %v1708
    %1933 = vmatpush2.bf16.msra.mxu0 %v1707
    %1934 = vmatprep.subr.bf16.mxu0 %v1704
    %1935 = vmatpush2.bf16.msra.mxu0 %v1703
    %1936 = vmatprep.mubr.bf16.mxu0 %v1072
    %1937 = vmatmul.mubr.bf16.gmra.mxu0 %v1071
    %v1938 = vpop.f32.mrf.mxu0
    %v1939 = vadd.f32 %v1898, %v1938
    %v1940 = vpop.f32.mrf.mxu0
    %v1941 = vadd.f32 %v1900, %v1940
    %v1942 = vpop.f32.mrf.mxu0
    %v1943 = vpop.f32.mrf.mxu0
    %1944 = vdwg.mxu0
    %1945 = vmatprep.subr.bf16.mxu0 %v1638
    %1946 = vmatpush1.bf16.msra.mxu0 %v1637
    %1947 = vmatprep.subr.bf16.mxu0 %v1634
    %1948 = vmatpush1.bf16.msra.mxu0 %v1633
    %1949 = vmatprep.subr.bf16.mxu0 %v1630
    %1950 = vmatpush1.bf16.msra.mxu0 %v1629
    %1951 = vmatprep.subr.bf16.mxu0 %v1626
    %1952 = vmatpush1.bf16.msra.mxu0 %v1625
    %1953 = vmatprep.subr.bf16.mxu0 %v1622
    %1954 = vmatpush1.bf16.msra.mxu0 %v1621
    %1955 = vmatprep.subr.bf16.mxu0 %v1618
    %1956 = vmatpush1.bf16.msra.mxu0 %v1617
    %1957 = vmatprep.subr.bf16.mxu0 %v1614
    %1958 = vmatpush1.bf16.msra.mxu0 %v1613
    %1959 = vmatprep.subr.bf16.mxu0 %v1610
    %1960 = vmatpush1.bf16.msra.mxu0 %v1609
    %1961 = vmatprep.subr.bf16.mxu0 %v1670
    %1962 = vmatpush2.bf16.msra.mxu0 %v1669
    %1963 = vmatprep.subr.bf16.mxu0 %v1666
    %1964 = vmatpush2.bf16.msra.mxu0 %v1665
    %1965 = vmatprep.subr.bf16.mxu0 %v1662
    %1966 = vmatpush2.bf16.msra.mxu0 %v1661
    %1967 = vmatprep.subr.bf16.mxu0 %v1658
    %1968 = vmatpush2.bf16.msra.mxu0 %v1657
    %1969 = vmatprep.subr.bf16.mxu0 %v1654
    %1970 = vmatpush2.bf16.msra.mxu0 %v1653
    %1971 = vmatprep.subr.bf16.mxu0 %v1650
    %1972 = vmatpush2.bf16.msra.mxu0 %v1649
    %1973 = vmatprep.subr.bf16.mxu0 %v1646
    %1974 = vmatpush2.bf16.msra.mxu0 %v1645
    %1975 = vmatprep.subr.bf16.mxu0 %v1642
    %1976 = vmatpush2.bf16.msra.mxu0 %v1641
    %1977 = vmatprep.mubr.bf16.mxu0 %v1070
    %1978 = vmatmul.mubr.bf16.gmra.mxu0 %v1069
    %v1979 = vpop.f32.mrf.mxu0
    %v1980 = vadd.f32 %v1214, %v1979
    %v1981 = vpop.f32.mrf.mxu0
    %v1982 = vadd.f32 %v1218, %v1981
    %v1983 = vpop.f32.mrf.mxu0
    %v1984 = vpop.f32.mrf.mxu0
    %1985 = vdwg.mxu0
    %1986 = vmatprep.subr.bf16.mxu0 %v1702
    %1987 = vmatpush1.bf16.msra.mxu0 %v1701
    %1988 = vmatprep.subr.bf16.mxu0 %v1698
    %1989 = vmatpush1.bf16.msra.mxu0 %v1697
    %1990 = vmatprep.subr.bf16.mxu0 %v1694
    %1991 = vmatpush1.bf16.msra.mxu0 %v1693
    %1992 = vmatprep.subr.bf16.mxu0 %v1690
    %1993 = vmatpush1.bf16.msra.mxu0 %v1689
    %1994 = vmatprep.subr.bf16.mxu0 %v1686
    %1995 = vmatpush1.bf16.msra.mxu0 %v1685
    %1996 = vmatprep.subr.bf16.mxu0 %v1682
    %1997 = vmatpush1.bf16.msra.mxu0 %v1681
    %1998 = vmatprep.subr.bf16.mxu0 %v1678
    %1999 = vmatpush1.bf16.msra.mxu0 %v1677
    %2000 = vmatprep.subr.bf16.mxu0 %v1674
    %2001 = vmatpush1.bf16.msra.mxu0 %v1673
    %2002 = vmatprep.subr.bf16.mxu0 %v1734
    %2003 = vmatpush2.bf16.msra.mxu0 %v1733
    %2004 = vmatprep.subr.bf16.mxu0 %v1730
    %2005 = vmatpush2.bf16.msra.mxu0 %v1729
    %2006 = vmatprep.subr.bf16.mxu0 %v1726
    %2007 = vmatpush2.bf16.msra.mxu0 %v1725
    %2008 = vmatprep.subr.bf16.mxu0 %v1722
    %2009 = vmatpush2.bf16.msra.mxu0 %v1721
    %2010 = vmatprep.subr.bf16.mxu0 %v1718
    %2011 = vmatpush2.bf16.msra.mxu0 %v1717
    %2012 = vmatprep.subr.bf16.mxu0 %v1714
    %2013 = vmatpush2.bf16.msra.mxu0 %v1713
    %2014 = vmatprep.subr.bf16.mxu0 %v1710
    %2015 = vmatpush2.bf16.msra.mxu0 %v1709
    %2016 = vmatprep.subr.bf16.mxu0 %v1706
    %2017 = vmatpush2.bf16.msra.mxu0 %v1705
    %2018 = vmatprep.mubr.bf16.mxu0 %v1072
    %2019 = vmatmul.mubr.bf16.gmra.mxu0 %v1071
    %v2020 = vpop.f32.mrf.mxu0
    %v2021 = vadd.f32 %v1980, %v2020
    %v2022 = vpop.f32.mrf.mxu0
    %v2023 = vadd.f32 %v1982, %v2022
    %v2024 = vpop.f32.mrf.mxu0
    %v2025 = vpop.f32.mrf.mxu0
    %2026 = vdwg.mxu0
    %vm2027 = vcmp.ge.f32.partialorder %v1939, 0.0
    %vm2028 = vcmp.ge.f32.partialorder %v1941, 0.0
    %vm2029 = vcmp.ge.f32.partialorder %v2021, 0.0
    %vm2030 = vcmp.ge.f32.partialorder %v2023, 0.0
    %v2031 = vmul.f32 %v1060, %v1939
    %v2032 = vmul.f32 %v1060, %v1941
    %v2033 = vmul.f32 %v1060, %v2021
    %v2034 = vmul.f32 %v1060, %v2023
    %v2035 = vsel %vm2027, %v1939, %v2031
    %v2036 = vsel %vm2028, %v1941, %v2032
    %v2037 = vsel %vm2029, %v2021, %v2033
    %v2038 = vsel %vm2030, %v2023, %v2034
    %v2039 = vpack.c.bf16 %v2035, %v2035
    %v2040 = vpack.c.bf16 %v2036, %v2036
    %v2041 = vpack.c.bf16 %v2037, %v2037
    %v2042 = vpack.c.bf16 %v2038, %v2038
    %v2043 = vld [vmem:[#allocation9] sm:$0xff]
    %v2044 = vld [vmem:[#allocation9 + $0x8] sm:$0xf]
    %v2045 = vld [vmem:[#allocation9 + $0xc] sm:$0xff]
    %v2046 = vld [vmem:[#allocation9 + $0x14] sm:$0xf]
    %v2047 = vld [vmem:[#allocation9 + $0x18] sm:$0xff]
    %v2048 = vld [vmem:[#allocation9 + $0x20] sm:$0xf]
    %v2049 = vld [vmem:[#allocation9 + $0x24] sm:$0xff]
    %v2050 = vld [vmem:[#allocation9 + $0x2c] sm:$0xf]
    %v2051 = vld [vmem:[#allocation9 + $0x30] sm:$0xff]
    %v2052 = vld [vmem:[#allocation9 + $0x38] sm:$0xf]
    %v2053 = vld [vmem:[#allocation9 + $0x3c] sm:$0xff]
    %v2054 = vld [vmem:[#allocation9 + $0x44] sm:$0xf]
    %v2055 = vld [vmem:[#allocation9 + $0x48] sm:$0xff]
    %v2056 = vld [vmem:[#allocation9 + $0x50] sm:$0xf]
    %v2057 = vld [vmem:[#allocation9 + $0x54] sm:$0xff]
    %v2058 = vld [vmem:[#allocation9 + $0x5c] sm:$0xf]
    %v2059 = vld [vmem:[#allocation9 + $0x60] sm:$0xff]
    %v2060 = vld [vmem:[#allocation9 + $0x68] sm:$0xf]
    %v2061 = vld [vmem:[#allocation9 + $0x6c] sm:$0xff]
    %v2062 = vld [vmem:[#allocation9 + $0x74] sm:$0xf]
    %v2063 = vld [vmem:[#allocation9 + $0x78] sm:$0xff]
    %v2064 = vld [vmem:[#allocation9 + $0x80] sm:$0xf]
    %v2065 = vld [vmem:[#allocation9 + $0x84] sm:$0xff]
    %v2066 = vld [vmem:[#allocation9 + $0x8c] sm:$0xf]
    %v2067 = vld [vmem:[#allocation9 + $0x90] sm:$0xff]
    %v2068 = vld [vmem:[#allocation9 + $0x98] sm:$0xf]
    %v2069 = vld [vmem:[#allocation9 + $0x9c] sm:$0xff]
    %v2070 = vld [vmem:[#allocation9 + $0xa4] sm:$0xf]
    %v2071 = vld [vmem:[#allocation9 + $0xa8] sm:$0xff]
    %v2072 = vld [vmem:[#allocation9 + $0xb0] sm:$0xf]
    %v2073 = vld [vmem:[#allocation9 + $0xb4] sm:$0xff]
    %v2074 = vld [vmem:[#allocation9 + $0xbc] sm:$0xf]
    %v2075 = vld [vmem:[#allocation9 + $0xc0] sm:$0xff]
    %v2076 = vld [vmem:[#allocation9 + $0xc8] sm:$0xf]
    %v2077 = vld [vmem:[#allocation9 + $0xcc] sm:$0xff]
    %v2078 = vld [vmem:[#allocation9 + $0xd4] sm:$0xf]
    %v2079 = vld [vmem:[#allocation9 + $0xd8] sm:$0xff]
    %v2080 = vld [vmem:[#allocation9 + $0xe0] sm:$0xf]
    %v2081 = vld [vmem:[#allocation9 + $0xe4] sm:$0xff]
    %v2082 = vld [vmem:[#allocation9 + $0xec] sm:$0xf]
    %v2083 = vld [vmem:[#allocation9 + $0xf0] sm:$0xff]
    %v2084 = vld [vmem:[#allocation9 + $0xf8] sm:$0xf]
    %v2085 = vld [vmem:[#allocation9 + $0xfc] sm:$0xff]
    %v2086 = vld [vmem:[#allocation9 + $0x104] sm:$0xf]
    %v2087 = vld [vmem:[#allocation9 + $0x108] sm:$0xff]
    %v2088 = vld [vmem:[#allocation9 + $0x110] sm:$0xf]
    %v2089 = vld [vmem:[#allocation9 + $0x114] sm:$0xff]
    %v2090 = vld [vmem:[#allocation9 + $0x11c] sm:$0xf]
    %v2091 = vld [vmem:[#allocation9 + $0x120] sm:$0xff]
    %v2092 = vld [vmem:[#allocation9 + $0x128] sm:$0xf]
    %v2093 = vld [vmem:[#allocation9 + $0x12c] sm:$0xff]
    %v2094 = vld [vmem:[#allocation9 + $0x134] sm:$0xf]
    %v2095 = vld [vmem:[#allocation9 + $0x138] sm:$0xff]
    %v2096 = vld [vmem:[#allocation9 + $0x140] sm:$0xf]
    %v2097 = vld [vmem:[#allocation9 + $0x144] sm:$0xff]
    %v2098 = vld [vmem:[#allocation9 + $0x14c] sm:$0xf]
    %v2099 = vld [vmem:[#allocation9 + $0x150] sm:$0xff]
    %v2100 = vld [vmem:[#allocation9 + $0x158] sm:$0xf]
    %v2101 = vld [vmem:[#allocation9 + $0x15c] sm:$0xff]
    %v2102 = vld [vmem:[#allocation9 + $0x164] sm:$0xf]
    %v2103 = vld [vmem:[#allocation9 + $0x168] sm:$0xff]
    %v2104 = vld [vmem:[#allocation9 + $0x170] sm:$0xf]
    %v2105 = vld [vmem:[#allocation9 + $0x174] sm:$0xff]
    %v2106 = vld [vmem:[#allocation9 + $0x17c] sm:$0xf]
    %v2107 = vld [vmem:[#allocation9 + $0x180] sm:$0xff]
    %v2108 = vld [vmem:[#allocation9 + $0x188] sm:$0xf]
    %v2109 = vld [vmem:[#allocation9 + $0x18c] sm:$0xff]
    %v2110 = vld [vmem:[#allocation9 + $0x194] sm:$0xf]
    %v2111 = vld [vmem:[#allocation9 + $0x198] sm:$0xff]
    %v2112 = vld [vmem:[#allocation9 + $0x1a0] sm:$0xf]
    %v2113 = vld [vmem:[#allocation9 + $0x1a4] sm:$0xff]
    %v2114 = vld [vmem:[#allocation9 + $0x1ac] sm:$0xf]
    %v2115 = vld [vmem:[#allocation9 + $0x1b0] sm:$0xff]
    %v2116 = vld [vmem:[#allocation9 + $0x1b8] sm:$0xf]
    %v2117 = vld [vmem:[#allocation9 + $0x1bc] sm:$0xff]
    %v2118 = vld [vmem:[#allocation9 + $0x1c4] sm:$0xf]
    %v2119 = vld [vmem:[#allocation9 + $0x1c8] sm:$0xff]
    %v2120 = vld [vmem:[#allocation9 + $0x1d0] sm:$0xf]
    %v2121 = vld [vmem:[#allocation9 + $0x1d4] sm:$0xff]
    %v2122 = vld [vmem:[#allocation9 + $0x1dc] sm:$0xf]
    %v2123 = vld [vmem:[#allocation9 + $0x1e0] sm:$0xff]
    %v2124 = vld [vmem:[#allocation9 + $0x1e8] sm:$0xf]
    %v2125 = vld [vmem:[#allocation9 + $0x1ec] sm:$0xff]
    %v2126 = vld [vmem:[#allocation9 + $0x1f4] sm:$0xf]
    %v2127 = vld [vmem:[#allocation9 + $0x1f8] sm:$0xff]
    %v2128 = vld [vmem:[#allocation9 + $0x200] sm:$0xf]
    %v2129 = vld [vmem:[#allocation9 + $0x204] sm:$0xff]
    %v2130 = vld [vmem:[#allocation9 + $0x20c] sm:$0xf]
    %v2131 = vld [vmem:[#allocation9 + $0x210] sm:$0xff]
    %v2132 = vld [vmem:[#allocation9 + $0x218] sm:$0xf]
    %v2133 = vld [vmem:[#allocation9 + $0x21c] sm:$0xff]
    %v2134 = vld [vmem:[#allocation9 + $0x224] sm:$0xf]
    %v2135 = vld [vmem:[#allocation9 + $0x228] sm:$0xff]
    %v2136 = vld [vmem:[#allocation9 + $0x230] sm:$0xf]
    %v2137 = vld [vmem:[#allocation9 + $0x234] sm:$0xff]
    %v2138 = vld [vmem:[#allocation9 + $0x23c] sm:$0xf]
    %v2139 = vld [vmem:[#allocation9 + $0x240] sm:$0xff]
    %v2140 = vld [vmem:[#allocation9 + $0x248] sm:$0xf]
    %v2141 = vld [vmem:[#allocation9 + $0x24c] sm:$0xff]
    %v2142 = vld [vmem:[#allocation9 + $0x254] sm:$0xf]
    %v2143 = vld [vmem:[#allocation9 + $0x258] sm:$0xff]
    %v2144 = vld [vmem:[#allocation9 + $0x260] sm:$0xf]
    %v2145 = vld [vmem:[#allocation9 + $0x264] sm:$0xff]
    %v2146 = vld [vmem:[#allocation9 + $0x26c] sm:$0xf]
    %v2147 = vld [vmem:[#allocation9 + $0x270] sm:$0xff]
    %v2148 = vld [vmem:[#allocation9 + $0x278] sm:$0xf]
    %v2149 = vld [vmem:[#allocation9 + $0x27c] sm:$0xff]
    %v2150 = vld [vmem:[#allocation9 + $0x284] sm:$0xf]
    %v2151 = vld [vmem:[#allocation9 + $0x288] sm:$0xff]
    %v2152 = vld [vmem:[#allocation9 + $0x290] sm:$0xf]
    %v2153 = vld [vmem:[#allocation9 + $0x294] sm:$0xff]
    %v2154 = vld [vmem:[#allocation9 + $0x29c] sm:$0xf]
    %v2155 = vld [vmem:[#allocation9 + $0x2a0] sm:$0xff]
    %v2156 = vld [vmem:[#allocation9 + $0x2a8] sm:$0xf]
    %v2157 = vld [vmem:[#allocation9 + $0x2ac] sm:$0xff]
    %v2158 = vld [vmem:[#allocation9 + $0x2b4] sm:$0xf]
    %v2159 = vld [vmem:[#allocation9 + $0x2b8] sm:$0xff]
    %v2160 = vld [vmem:[#allocation9 + $0x2c0] sm:$0xf]
    %v2161 = vld [vmem:[#allocation9 + $0x2c4] sm:$0xff]
    %v2162 = vld [vmem:[#allocation9 + $0x2cc] sm:$0xf]
    %v2163 = vld [vmem:[#allocation9 + $0x2d0] sm:$0xff]
    %v2164 = vld [vmem:[#allocation9 + $0x2d8] sm:$0xf]
    %v2165 = vld [vmem:[#allocation9 + $0x2dc] sm:$0xff]
    %v2166 = vld [vmem:[#allocation9 + $0x2e4] sm:$0xf]
    %v2167 = vld [vmem:[#allocation9 + $0x2e8] sm:$0xff]
    %v2168 = vld [vmem:[#allocation9 + $0x2f0] sm:$0xf]
    %v2169 = vld [vmem:[#allocation9 + $0x2f4] sm:$0xff]
    %v2170 = vld [vmem:[#allocation9 + $0x2fc] sm:$0xf]
    %v2171 = vld [vmem:[%s7] sm:$0x7]
    %v2173 = vlaneseq
    %v2174 = vshrl.u32 %v2173, 7
    %v2175 = vsub.s32 0, %v2174
    %v2176 = vrot.slane %v2171, %v2175
    %v2177 = vlaneseq
    %v2178 = vshrl.u32 %v2177, 7
    %v2179 = vsub.s32 1, %v2178
    %v2180 = vrot.slane %v2171, %v2179
    %v2181 = vlaneseq
    %v2182 = vshrl.u32 %v2181, 7
    %v2183 = vsub.s32 2, %v2182
    %v2184 = vrot.slane %v2171, %v2183
    %v2316 = vunpack.c.l.b16 %v2043
    %v2317 = vunpack.c.h.b16 %v2043
    %v2318 = vunpack.c.l.b16 %v2044
    %v2319 = vunpack.c.l.b16 %v2045
    %v2320 = vunpack.c.h.b16 %v2045
    %v2321 = vunpack.c.l.b16 %v2046
    %v2322 = vunpack.c.l.b16 %v2047
    %v2323 = vunpack.c.h.b16 %v2047
    %v2324 = vunpack.c.l.b16 %v2048
    %v2325 = vunpack.c.l.b16 %v2049
    %v2326 = vunpack.c.h.b16 %v2049
    %v2327 = vunpack.c.l.b16 %v2050
    %v2328 = vunpack.c.l.b16 %v2051
    %v2329 = vunpack.c.h.b16 %v2051
    %v2330 = vunpack.c.l.b16 %v2052
    %v2331 = vunpack.c.l.b16 %v2053
    %v2332 = vunpack.c.h.b16 %v2053
    %v2333 = vunpack.c.l.b16 %v2054
    %v2334 = vunpack.c.l.b16 %v2055
    %v2335 = vunpack.c.h.b16 %v2055
    %v2336 = vunpack.c.l.b16 %v2056
    %v2337 = vunpack.c.l.b16 %v2057
    %v2338 = vunpack.c.h.b16 %v2057
    %v2339 = vunpack.c.l.b16 %v2058
    %v2340 = vunpack.c.l.b16 %v2059
    %v2341 = vunpack.c.h.b16 %v2059
    %v2342 = vunpack.c.l.b16 %v2060
    %v2343 = vunpack.c.l.b16 %v2061
    %v2344 = vunpack.c.h.b16 %v2061
    %v2345 = vunpack.c.l.b16 %v2062
    %v2346 = vunpack.c.l.b16 %v2063
    %v2347 = vunpack.c.h.b16 %v2063
    %v2348 = vunpack.c.l.b16 %v2064
    %v2349 = vunpack.c.l.b16 %v2065
    %v2350 = vunpack.c.h.b16 %v2065
    %v2351 = vunpack.c.l.b16 %v2066
    %v2352 = vunpack.c.l.b16 %v2067
    %v2353 = vunpack.c.h.b16 %v2067
    %v2354 = vunpack.c.l.b16 %v2068
    %v2355 = vunpack.c.l.b16 %v2069
    %v2356 = vunpack.c.h.b16 %v2069
    %v2357 = vunpack.c.l.b16 %v2070
    %v2358 = vunpack.c.l.b16 %v2071
    %v2359 = vunpack.c.h.b16 %v2071
    %v2360 = vunpack.c.l.b16 %v2072
    %v2361 = vunpack.c.l.b16 %v2073
    %v2362 = vunpack.c.h.b16 %v2073
    %v2363 = vunpack.c.l.b16 %v2074
    %v2364 = vunpack.c.l.b16 %v2075
    %v2365 = vunpack.c.h.b16 %v2075
    %v2366 = vunpack.c.l.b16 %v2076
    %v2367 = vunpack.c.l.b16 %v2077
    %v2368 = vunpack.c.h.b16 %v2077
    %v2369 = vunpack.c.l.b16 %v2078
    %v2370 = vunpack.c.l.b16 %v2079
    %v2371 = vunpack.c.h.b16 %v2079
    %v2372 = vunpack.c.l.b16 %v2080
    %v2373 = vunpack.c.l.b16 %v2081
    %v2374 = vunpack.c.h.b16 %v2081
    %v2375 = vunpack.c.l.b16 %v2082
    %v2376 = vunpack.c.l.b16 %v2083
    %v2377 = vunpack.c.h.b16 %v2083
    %v2378 = vunpack.c.l.b16 %v2084
    %v2379 = vunpack.c.l.b16 %v2085
    %v2380 = vunpack.c.h.b16 %v2085
    %v2381 = vunpack.c.l.b16 %v2086
    %v2382 = vunpack.c.l.b16 %v2087
    %v2383 = vunpack.c.h.b16 %v2087
    %v2384 = vunpack.c.l.b16 %v2088
    %v2385 = vunpack.c.l.b16 %v2089
    %v2386 = vunpack.c.h.b16 %v2089
    %v2387 = vunpack.c.l.b16 %v2090
    %v2388 = vunpack.c.l.b16 %v2091
    %v2389 = vunpack.c.h.b16 %v2091
    %v2390 = vunpack.c.l.b16 %v2092
    %v2391 = vunpack.c.l.b16 %v2093
    %v2392 = vunpack.c.h.b16 %v2093
    %v2393 = vunpack.c.l.b16 %v2094
    %v2394 = vunpack.c.l.b16 %v2095
    %v2395 = vunpack.c.h.b16 %v2095
    %v2396 = vunpack.c.l.b16 %v2096
    %v2397 = vunpack.c.l.b16 %v2097
    %v2398 = vunpack.c.h.b16 %v2097
    %v2399 = vunpack.c.l.b16 %v2098
    %v2400 = vunpack.c.l.b16 %v2099
    %v2401 = vunpack.c.h.b16 %v2099
    %v2402 = vunpack.c.l.b16 %v2100
    %v2403 = vunpack.c.l.b16 %v2101
    %v2404 = vunpack.c.h.b16 %v2101
    %v2405 = vunpack.c.l.b16 %v2102
    %v2406 = vunpack.c.l.b16 %v2103
    %v2407 = vunpack.c.h.b16 %v2103
    %v2408 = vunpack.c.l.b16 %v2104
    %v2409 = vunpack.c.l.b16 %v2105
    %v2410 = vunpack.c.h.b16 %v2105
    %v2411 = vunpack.c.l.b16 %v2106
    %v2412 = vunpack.c.l.b16 %v2107
    %v2413 = vunpack.c.h.b16 %v2107
    %v2414 = vunpack.c.l.b16 %v2108
    %v2415 = vunpack.c.l.b16 %v2109
    %v2416 = vunpack.c.h.b16 %v2109
    %v2417 = vunpack.c.l.b16 %v2110
    %v2418 = vunpack.c.l.b16 %v2111
    %v2419 = vunpack.c.h.b16 %v2111
    %v2420 = vunpack.c.l.b16 %v2112
    %v2421 = vunpack.c.l.b16 %v2113
    %v2422 = vunpack.c.h.b16 %v2113
    %v2423 = vunpack.c.l.b16 %v2114
    %v2424 = vunpack.c.l.b16 %v2115
    %v2425 = vunpack.c.h.b16 %v2115
    %v2426 = vunpack.c.l.b16 %v2116
    %v2427 = vunpack.c.l.b16 %v2117
    %v2428 = vunpack.c.h.b16 %v2117
    %v2429 = vunpack.c.l.b16 %v2118
    %v2430 = vunpack.c.l.b16 %v2119
    %v2431 = vunpack.c.h.b16 %v2119
    %v2432 = vunpack.c.l.b16 %v2120
    %v2433 = vunpack.c.l.b16 %v2121
    %v2434 = vunpack.c.h.b16 %v2121
    %v2435 = vunpack.c.l.b16 %v2122
    %v2436 = vunpack.c.l.b16 %v2123
    %v2437 = vunpack.c.h.b16 %v2123
    %v2438 = vunpack.c.l.b16 %v2124
    %v2439 = vunpack.c.l.b16 %v2125
    %v2440 = vunpack.c.h.b16 %v2125
    %v2441 = vunpack.c.l.b16 %v2126
    %v2442 = vunpack.c.l.b16 %v2127
    %v2443 = vunpack.c.h.b16 %v2127
    %v2444 = vunpack.c.l.b16 %v2128
    %v2445 = vunpack.c.l.b16 %v2129
    %v2446 = vunpack.c.h.b16 %v2129
    %v2447 = vunpack.c.l.b16 %v2130
    %v2448 = vunpack.c.l.b16 %v2131
    %v2449 = vunpack.c.h.b16 %v2131
    %v2450 = vunpack.c.l.b16 %v2132
    %v2451 = vunpack.c.l.b16 %v2133
    %v2452 = vunpack.c.h.b16 %v2133
    %v2453 = vunpack.c.l.b16 %v2134
    %v2454 = vunpack.c.l.b16 %v2135
    %v2455 = vunpack.c.h.b16 %v2135
    %v2456 = vunpack.c.l.b16 %v2136
    %v2457 = vunpack.c.l.b16 %v2137
    %v2458 = vunpack.c.h.b16 %v2137
    %v2459 = vunpack.c.l.b16 %v2138
    %v2460 = vunpack.c.l.b16 %v2139
    %v2461 = vunpack.c.h.b16 %v2139
    %v2462 = vunpack.c.l.b16 %v2140
    %v2463 = vunpack.c.l.b16 %v2141
    %v2464 = vunpack.c.h.b16 %v2141
    %v2465 = vunpack.c.l.b16 %v2142
    %v2466 = vunpack.c.l.b16 %v2143
    %v2467 = vunpack.c.h.b16 %v2143
    %v2468 = vunpack.c.l.b16 %v2144
    %v2469 = vunpack.c.l.b16 %v2145
    %v2470 = vunpack.c.h.b16 %v2145
    %v2471 = vunpack.c.l.b16 %v2146
    %v2472 = vunpack.c.l.b16 %v2147
    %v2473 = vunpack.c.h.b16 %v2147
    %v2474 = vunpack.c.l.b16 %v2148
    %v2475 = vunpack.c.l.b16 %v2149
    %v2476 = vunpack.c.h.b16 %v2149
    %v2477 = vunpack.c.l.b16 %v2150
    %v2478 = vunpack.c.l.b16 %v2151
    %v2479 = vunpack.c.h.b16 %v2151
    %v2480 = vunpack.c.l.b16 %v2152
    %v2481 = vunpack.c.l.b16 %v2153
    %v2482 = vunpack.c.h.b16 %v2153
    %v2483 = vunpack.c.l.b16 %v2154
    %v2484 = vunpack.c.l.b16 %v2155
    %v2485 = vunpack.c.h.b16 %v2155
    %v2486 = vunpack.c.l.b16 %v2156
    %v2487 = vunpack.c.l.b16 %v2157
    %v2488 = vunpack.c.h.b16 %v2157
    %v2489 = vunpack.c.l.b16 %v2158
    %v2490 = vunpack.c.l.b16 %v2159
    %v2491 = vunpack.c.h.b16 %v2159
    %v2492 = vunpack.c.l.b16 %v2160
    %v2493 = vunpack.c.l.b16 %v2161
    %v2494 = vunpack.c.h.b16 %v2161
    %v2495 = vunpack.c.l.b16 %v2162
    %v2496 = vunpack.c.l.b16 %v2163
    %v2497 = vunpack.c.h.b16 %v2163
    %v2498 = vunpack.c.l.b16 %v2164
    %v2499 = vunpack.c.l.b16 %v2165
    %v2500 = vunpack.c.h.b16 %v2165
    %v2501 = vunpack.c.l.b16 %v2166
    %v2502 = vunpack.c.l.b16 %v2167
    %v2503 = vunpack.c.h.b16 %v2167
    %v2504 = vunpack.c.l.b16 %v2168
    %v2505 = vunpack.c.l.b16 %v2169
    %v2506 = vunpack.c.h.b16 %v2169
    %v2507 = vunpack.c.l.b16 %v2170
    %v2508 = vpack.c.b16 %v2319, %v2316
    %v2509 = vpack.c.b16 %v2320, %v2317
    %v2510 = vpack.c.b16 %v2321, %v2318
    %v2511 = vpack.c.b16 %v2325, %v2322
    %v2512 = vpack.c.b16 %v2326, %v2323
    %v2513 = vpack.c.b16 %v2327, %v2324
    %v2514 = vpack.c.b16 %v2331, %v2328
    %v2515 = vpack.c.b16 %v2332, %v2329
    %v2516 = vpack.c.b16 %v2333, %v2330
    %v2517 = vpack.c.b16 %v2337, %v2334
    %v2518 = vpack.c.b16 %v2338, %v2335
    %v2519 = vpack.c.b16 %v2339, %v2336
    %v2520 = vpack.c.b16 %v2343, %v2340
    %v2521 = vpack.c.b16 %v2344, %v2341
    %v2522 = vpack.c.b16 %v2345, %v2342
    %v2523 = vpack.c.b16 %v2349, %v2346
    %v2524 = vpack.c.b16 %v2350, %v2347
    %v2525 = vpack.c.b16 %v2351, %v2348
    %v2526 = vpack.c.b16 %v2355, %v2352
    %v2527 = vpack.c.b16 %v2356, %v2353
    %v2528 = vpack.c.b16 %v2357, %v2354
    %v2529 = vpack.c.b16 %v2361, %v2358
    %v2530 = vpack.c.b16 %v2362, %v2359
    %v2531 = vpack.c.b16 %v2363, %v2360
    %v2532 = vpack.c.b16 %v2367, %v2364
    %v2533 = vpack.c.b16 %v2368, %v2365
    %v2534 = vpack.c.b16 %v2369, %v2366
    %v2535 = vpack.c.b16 %v2373, %v2370
    %v2536 = vpack.c.b16 %v2374, %v2371
    %v2537 = vpack.c.b16 %v2375, %v2372
    %v2538 = vpack.c.b16 %v2379, %v2376
    %v2539 = vpack.c.b16 %v2380, %v2377
    %v2540 = vpack.c.b16 %v2381, %v2378
    %v2541 = vpack.c.b16 %v2385, %v2382
    %v2542 = vpack.c.b16 %v2386, %v2383
    %v2543 = vpack.c.b16 %v2387, %v2384
    %v2544 = vpack.c.b16 %v2391, %v2388
    %v2545 = vpack.c.b16 %v2392, %v2389
    %v2546 = vpack.c.b16 %v2393, %v2390
    %v2547 = vpack.c.b16 %v2397, %v2394
    %v2548 = vpack.c.b16 %v2398, %v2395
    %v2549 = vpack.c.b16 %v2399, %v2396
    %v2550 = vpack.c.b16 %v2403, %v2400
    %v2551 = vpack.c.b16 %v2404, %v2401
    %v2552 = vpack.c.b16 %v2405, %v2402
    %v2553 = vpack.c.b16 %v2409, %v2406
    %v2554 = vpack.c.b16 %v2410, %v2407
    %v2555 = vpack.c.b16 %v2411, %v2408
    %v2556 = vpack.c.b16 %v2415, %v2412
    %v2557 = vpack.c.b16 %v2416, %v2413
    %v2558 = vpack.c.b16 %v2417, %v2414
    %v2559 = vpack.c.b16 %v2421, %v2418
    %v2560 = vpack.c.b16 %v2422, %v2419
    %v2561 = vpack.c.b16 %v2423, %v2420
    %v2562 = vpack.c.b16 %v2427, %v2424
    %v2563 = vpack.c.b16 %v2428, %v2425
    %v2564 = vpack.c.b16 %v2429, %v2426
    %v2565 = vpack.c.b16 %v2433, %v2430
    %v2566 = vpack.c.b16 %v2434, %v2431
    %v2567 = vpack.c.b16 %v2435, %v2432
    %v2568 = vpack.c.b16 %v2439, %v2436
    %v2569 = vpack.c.b16 %v2440, %v2437
    %v2570 = vpack.c.b16 %v2441, %v2438
    %v2571 = vpack.c.b16 %v2445, %v2442
    %v2572 = vpack.c.b16 %v2446, %v2443
    %v2573 = vpack.c.b16 %v2447, %v2444
    %v2574 = vpack.c.b16 %v2451, %v2448
    %v2575 = vpack.c.b16 %v2452, %v2449
    %v2576 = vpack.c.b16 %v2453, %v2450
    %v2577 = vpack.c.b16 %v2457, %v2454
    %v2578 = vpack.c.b16 %v2458, %v2455
    %v2579 = vpack.c.b16 %v2459, %v2456
    %v2580 = vpack.c.b16 %v2463, %v2460
    %v2581 = vpack.c.b16 %v2464, %v2461
    %v2582 = vpack.c.b16 %v2465, %v2462
    %v2583 = vpack.c.b16 %v2469, %v2466
    %v2584 = vpack.c.b16 %v2470, %v2467
    %v2585 = vpack.c.b16 %v2471, %v2468
    %v2586 = vpack.c.b16 %v2475, %v2472
    %v2587 = vpack.c.b16 %v2476, %v2473
    %v2588 = vpack.c.b16 %v2477, %v2474
    %v2589 = vpack.c.b16 %v2481, %v2478
    %v2590 = vpack.c.b16 %v2482, %v2479
    %v2591 = vpack.c.b16 %v2483, %v2480
    %v2592 = vpack.c.b16 %v2487, %v2484
    %v2593 = vpack.c.b16 %v2488, %v2485
    %v2594 = vpack.c.b16 %v2489, %v2486
    %v2595 = vpack.c.b16 %v2493, %v2490
    %v2596 = vpack.c.b16 %v2494, %v2491
    %v2597 = vpack.c.b16 %v2495, %v2492
    %v2598 = vpack.c.b16 %v2499, %v2496
    %v2599 = vpack.c.b16 %v2500, %v2497
    %v2600 = vpack.c.b16 %v2501, %v2498
    %v2601 = vpack.c.b16 %v2505, %v2502
    %v2602 = vpack.c.b16 %v2506, %v2503
    %v2603 = vpack.c.b16 %v2507, %v2504
    %2700 = vmatprep.subr.bf16.mxu0 %v2530
    %2701 = vmatpush1.bf16.msra.mxu0 %v2529
    %2702 = vmatprep.subr.bf16.mxu0 %v2527
    %2703 = vmatpush1.bf16.msra.mxu0 %v2526
    %2704 = vmatprep.subr.bf16.mxu0 %v2524
    %2705 = vmatpush1.bf16.msra.mxu0 %v2523
    %2706 = vmatprep.subr.bf16.mxu0 %v2521
    %2707 = vmatpush1.bf16.msra.mxu0 %v2520
    %2708 = vmatprep.subr.bf16.mxu0 %v2518
    %2709 = vmatpush1.bf16.msra.mxu0 %v2517
    %2710 = vmatprep.subr.bf16.mxu0 %v2515
    %2711 = vmatpush1.bf16.msra.mxu0 %v2514
    %2712 = vmatprep.subr.bf16.mxu0 %v2512
    %2713 = vmatpush1.bf16.msra.mxu0 %v2511
    %2714 = vmatprep.subr.bf16.mxu0 %v2509
    %2715 = vmatpush1.bf16.msra.mxu0 %v2508
    %2716 = vmatprep.subr.bf16.mxu0 %v2554
    %2717 = vmatpush2.bf16.msra.mxu0 %v2553
    %2718 = vmatprep.subr.bf16.mxu0 %v2551
    %2719 = vmatpush2.bf16.msra.mxu0 %v2550
    %2720 = vmatprep.subr.bf16.mxu0 %v2548
    %2721 = vmatpush2.bf16.msra.mxu0 %v2547
    %2722 = vmatprep.subr.bf16.mxu0 %v2545
    %2723 = vmatpush2.bf16.msra.mxu0 %v2544
    %2724 = vmatprep.subr.bf16.mxu0 %v2542
    %2725 = vmatpush2.bf16.msra.mxu0 %v2541
    %2726 = vmatprep.subr.bf16.mxu0 %v2539
    %2727 = vmatpush2.bf16.msra.mxu0 %v2538
    %2728 = vmatprep.subr.bf16.mxu0 %v2536
    %2729 = vmatpush2.bf16.msra.mxu0 %v2535
    %2730 = vmatprep.subr.bf16.mxu0 %v2533
    %2731 = vmatpush2.bf16.msra.mxu0 %v2532
    %2732 = vmatprep.mubr.bf16.mxu0 %v2040
    %2733 = vmatmul.mubr.bf16.gmra.mxu0 %v2039
    %v2734 = vpop.f32.mrf.mxu0
    %v2735 = vadd.f32 %v2176, %v2734
    %v2736 = vpop.f32.mrf.mxu0
    %v2737 = vadd.f32 %v2180, %v2736
    %v2738 = vpop.f32.mrf.mxu0
    %v2739 = vpop.f32.mrf.mxu0
    %2740 = vdwg.mxu0
    %2741 = vmatprep.subr.bf16.mxu0 %v2578
    %2742 = vmatpush1.bf16.msra.mxu0 %v2577
    %2743 = vmatprep.subr.bf16.mxu0 %v2575
    %2744 = vmatpush1.bf16.msra.mxu0 %v2574
    %2745 = vmatprep.subr.bf16.mxu0 %v2572
    %2746 = vmatpush1.bf16.msra.mxu0 %v2571
    %2747 = vmatprep.subr.bf16.mxu0 %v2569
    %2748 = vmatpush1.bf16.msra.mxu0 %v2568
    %2749 = vmatprep.subr.bf16.mxu0 %v2566
    %2750 = vmatpush1.bf16.msra.mxu0 %v2565
    %2751 = vmatprep.subr.bf16.mxu0 %v2563
    %2752 = vmatpush1.bf16.msra.mxu0 %v2562
    %2753 = vmatprep.subr.bf16.mxu0 %v2560
    %2754 = vmatpush1.bf16.msra.mxu0 %v2559
    %2755 = vmatprep.subr.bf16.mxu0 %v2557
    %2756 = vmatpush1.bf16.msra.mxu0 %v2556
    %2757 = vmatprep.subr.bf16.mxu0 %v2602
    %2758 = vmatpush2.bf16.msra.mxu0 %v2601
    %2759 = vmatprep.subr.bf16.mxu0 %v2599
    %2760 = vmatpush2.bf16.msra.mxu0 %v2598
    %2761 = vmatprep.subr.bf16.mxu0 %v2596
    %2762 = vmatpush2.bf16.msra.mxu0 %v2595
    %2763 = vmatprep.subr.bf16.mxu0 %v2593
    %2764 = vmatpush2.bf16.msra.mxu0 %v2592
    %2765 = vmatprep.subr.bf16.mxu0 %v2590
    %2766 = vmatpush2.bf16.msra.mxu0 %v2589
    %2767 = vmatprep.subr.bf16.mxu0 %v2587
    %2768 = vmatpush2.bf16.msra.mxu0 %v2586
    %2769 = vmatprep.subr.bf16.mxu0 %v2584
    %2770 = vmatpush2.bf16.msra.mxu0 %v2583
    %2771 = vmatprep.subr.bf16.mxu0 %v2581
    %2772 = vmatpush2.bf16.msra.mxu0 %v2580
    %2773 = vmatprep.mubr.bf16.mxu0 %v2042
    %2774 = vmatmul.mubr.bf16.gmra.mxu0 %v2041
    %v2775 = vpop.f32.mrf.mxu0
    %v2776 = vadd.f32 %v2735, %v2775
    %v2777 = vpop.f32.mrf.mxu0
    %v2778 = vadd.f32 %v2737, %v2777
    %v2779 = vpop.f32.mrf.mxu0
    %v2780 = vpop.f32.mrf.mxu0
    %2781 = vdwg.mxu0
    %2782 = vmatprep.subr.bf16.mxu0 0
    %2783 = vmatpush1.bf16.msra.mxu0 %v2531
    %2784 = vmatprep.subr.bf16.mxu0 0
    %2785 = vmatpush1.bf16.msra.mxu0 %v2528
    %2786 = vmatprep.subr.bf16.mxu0 0
    %2787 = vmatpush1.bf16.msra.mxu0 %v2525
    %2788 = vmatprep.subr.bf16.mxu0 0
    %2789 = vmatpush1.bf16.msra.mxu0 %v2522
    %2790 = vmatprep.subr.bf16.mxu0 0
    %2791 = vmatpush1.bf16.msra.mxu0 %v2519
    %2792 = vmatprep.subr.bf16.mxu0 0
    %2793 = vmatpush1.bf16.msra.mxu0 %v2516
    %2794 = vmatprep.subr.bf16.mxu0 0
    %2795 = vmatpush1.bf16.msra.mxu0 %v2513
    %2796 = vmatprep.subr.bf16.mxu0 0
    %2797 = vmatpush1.bf16.msra.mxu0 %v2510
    %2798 = vmatprep.subr.bf16.mxu0 0
    %2799 = vmatpush2.bf16.msra.mxu0 %v2555
    %2800 = vmatprep.subr.bf16.mxu0 0
    %2801 = vmatpush2.bf16.msra.mxu0 %v2552
    %2802 = vmatprep.subr.bf16.mxu0 0
    %2803 = vmatpush2.bf16.msra.mxu0 %v2549
    %2804 = vmatprep.subr.bf16.mxu0 0
    %2805 = vmatpush2.bf16.msra.mxu0 %v2546
    %2806 = vmatprep.subr.bf16.mxu0 0
    %2807 = vmatpush2.bf16.msra.mxu0 %v2543
    %2808 = vmatprep.subr.bf16.mxu0 0
    %2809 = vmatpush2.bf16.msra.mxu0 %v2540
    %2810 = vmatprep.subr.bf16.mxu0 0
    %2811 = vmatpush2.bf16.msra.mxu0 %v2537
    %2812 = vmatprep.subr.bf16.mxu0 0
    %2813 = vmatpush2.bf16.msra.mxu0 %v2534
    %2814 = vmatprep.mubr.bf16.mxu0 %v2040
    %2815 = vmatmul.mubr.bf16.gmra.mxu0 %v2039
    %v2816 = vpop.f32.mrf.mxu0
    %v2817 = vadd.f32 %v2184, %v2816
    %v2818 = vpop.f32.mrf.mxu0
    %v2819 = vpop.f32.mrf.mxu0
    %v2820 = vpop.f32.mrf.mxu0
    %2821 = vdwg.mxu0
    %2822 = vmatprep.subr.bf16.mxu0 0
    %2823 = vmatpush1.bf16.msra.mxu0 %v2579
    %2824 = vmatprep.subr.bf16.mxu0 0
    %2825 = vmatpush1.bf16.msra.mxu0 %v2576
    %2826 = vmatprep.subr.bf16.mxu0 0
    %2827 = vmatpush1.bf16.msra.mxu0 %v2573
    %2828 = vmatprep.subr.bf16.mxu0 0
    %2829 = vmatpush1.bf16.msra.mxu0 %v2570
    %2830 = vmatprep.subr.bf16.mxu0 0
    %2831 = vmatpush1.bf16.msra.mxu0 %v2567
    %2832 = vmatprep.subr.bf16.mxu0 0
    %2833 = vmatpush1.bf16.msra.mxu0 %v2564
    %2834 = vmatprep.subr.bf16.mxu0 0
    %2835 = vmatpush1.bf16.msra.mxu0 %v2561
    %2836 = vmatprep.subr.bf16.mxu0 0
    %2837 = vmatpush1.bf16.msra.mxu0 %v2558
    %2838 = vmatprep.subr.bf16.mxu0 0
    %2839 = vmatpush2.bf16.msra.mxu0 %v2603
    %2840 = vmatprep.subr.bf16.mxu0 0
    %2841 = vmatpush2.bf16.msra.mxu0 %v2600
    %2842 = vmatprep.subr.bf16.mxu0 0
    %2843 = vmatpush2.bf16.msra.mxu0 %v2597
    %2844 = vmatprep.subr.bf16.mxu0 0
    %2845 = vmatpush2.bf16.msra.mxu0 %v2594
    %2846 = vmatprep.subr.bf16.mxu0 0
    %2847 = vmatpush2.bf16.msra.mxu0 %v2591
    %2848 = vmatprep.subr.bf16.mxu0 0
    %2849 = vmatpush2.bf16.msra.mxu0 %v2588
    %2850 = vmatprep.subr.bf16.mxu0 0
    %2851 = vmatpush2.bf16.msra.mxu0 %v2585
    %2852 = vmatprep.subr.bf16.mxu0 0
    %2853 = vmatpush2.bf16.msra.mxu0 %v2582
    %2854 = vmatprep.mubr.bf16.mxu0 %v2042
    %2855 = vmatmul.mubr.bf16.gmra.mxu0 %v2041
    %v2856 = vpop.f32.mrf.mxu0
    %v2857 = vadd.f32 %v2817, %v2856
    %v2858 = vpop.f32.mrf.mxu0
    %v2859 = vpop.f32.mrf.mxu0
    %v2860 = vpop.f32.mrf.mxu0
    %2861 = vdwg.mxu0
    %2862 = vst [vmem:[#allocation11] sm:$0xff] %v2776
    %2863 = vst [vmem:[#allocation11 + $0x8] sm:$0xff] %v2778
    %2864 = vst [vmem:[#allocation11 + $0x10] sm:$0xff] %v2857
    // Predicated region
    $region50: #{tpu_custom_call.1} parent=1 // pred_check
      _
    $region51: #{tpu_custom_call.1} parent=1 // pred_check_branch
      %2866 = sbr.rel (0) target = $region53
    $region52: #{tpu_custom_call.1} parent=1 // pred_region
      %s2868 = ssub.s32 384, 384
      %2869 = vsyncadd [#allocation5], %s2868
      %s2871 = sshll.u32 [#allocation11], 4
      %s2872 = int_to_ptr.vmem [resolvable:$true] %s2871
      %2874 = dma.vmem_to_hbm [thread:$0]  %s2872, 384, %s8, [#allocation5]
    $region53: #{tpu_custom_call.1} parent=1 // pred_fallthru
      _
    // Predicated region
    $region54: #{tpu_custom_call.1} parent=1 // pred_check
      _
    $region55: #{tpu_custom_call.1} parent=1 // pred_check_branch
      %2876 = sbr.rel (0) target = $region57
    $region56: #{tpu_custom_call.1} parent=1 // pred_region
      %2877 = dma.done [#allocation5], 384
    $region57: #{tpu_custom_call.1} parent=1 // pred_fallthru
      _
    %2878 = vsyncpa [#allocation4], 1
    %2879 = vsyncpa [#allocation7], 1
    %2880 = vsyncpa [#allocation10], 1
    %2881 = vsyncpa [#allocation5], 1

</llo_original>
